<compile_context>
chip_gen: v6e
topology: v6e:2x2x1
jax: 0.10.0
libtpu: 0.0.40
codegen_flags: <defaults>
</compile_context>

<pallas_src>
import functools

import numpy as np
import jax
import jax.numpy as jnp
from jax import lax
from jax.experimental import pallas as pl
from jax.experimental.pallas import tpu as pltpu


def _round_up(x, m):
    return ((x + m - 1) // m) * m


# ---------------------------------------------------------------------------
# Kernel
# ---------------------------------------------------------------------------
def gru_kernel(x_ref, wih_ref, whh_ref, bgi_ref, bhn_ref, len_ref, out_ref,
               h_ref, *, hidden_size, unroll):
    """Grid = (batch_blocks, time_chunks); one invocation runs TT timesteps of
    the GRU recurrence for one TB-row batch block.

    Packed-gate lane layout (Wp = round_up(3H, 128)):
      [0:H)   r gate | [H:2H)  z gate | [2H:3H) n gate AND the hidden state h
      [3H:Wp) zero padding

    x_ref  : (TT, TB, E)  streamed embedding chunk
    wih_ref: (E, Wp)      input->gates weights (resident, constant index map)
    whh_ref: (Wp, Wp)     hidden->gates weights; nonzero rows only [2H:3H)
    bgi_ref: (1, Wp)      b_ih (all gates) + b_hh (r, z) pre-folded
    bhn_ref: (1, Wp)      b_hh of the n gate (cannot be pre-folded)
    len_ref: (TB, 1) i32  sequence lengths (0 for padded batch rows)
    out_ref: (TB, Wp)     hidden state at the last valid step
    h_ref  : (TB, Wp)     VMEM carry across the time-chunk grid axis
    """
    c = pl.program_id(1)
    H = hidden_size
    TT, TB, _ = x_ref.shape
    Wp = h_ref.shape[-1]

    @pl.when(c == 0)
    def _():
        h_ref[...] = jnp.zeros_like(h_ref)

    wih = wih_ref[...]                                  # (E, Wp)
    whh = whh_ref[...]                                  # (Wp, Wp)
    # Broadcasts hoisted out of the unrolled loop (JAX does not CSE them).
    bgi = jnp.broadcast_to(bgi_ref[...], (TB, Wp))
    bhn = jnp.broadcast_to(bhn_ref[...], (TB, Wp))
    lens = len_ref[...]                                 # (TB, 1)
    base = c * TT

    def step(tt, h):
        # Fused input projection: does not depend on h, so its MXU push can
        # overlap the serial recurrent chain (no HBM-materialized gi tensor).
        gi = jnp.dot(x_ref[tt], wih, preferred_element_type=jnp.float32) + bgi
        gh = jnp.dot(h, whh, preferred_element_type=jnp.float32)
        rz = jax.nn.sigmoid(gi + gh)            # r @ [0:H), z @ [H:2H)
        r_n = pltpu.roll(rz, 2 * H, 1)          # XLU: r -> n-gate lanes
        n = jnp.tanh(gi + r_n * (gh + bhn))     # valid @ [2H:3H)
        z_n = pltpu.roll(rz, H, 1)              # XLU: z -> n-gate lanes
        h_new = n + z_n * (h - n)               # == (1 - z) * n + z * h
        # Freeze once the sequence ended -> final h == hidden at step len-1.
        valid = (base + tt) < lens              # (TB, 1)
        return jnp.where(valid, h_new, h)

    h = lax.fori_loop(0, TT, step, h_ref[...], unroll=unroll)
    h_ref[...] = h

    @pl.when(c == pl.num_programs(1) - 1)
    def _():
        out_ref[...] = h


# ---------------------------------------------------------------------------
# One-time parameter repacking (hoisted out of the per-call path)
# ---------------------------------------------------------------------------
def prepare_gru_params(w_ih_t, w_hh_t, b_ih, b_hh):
    """Repack PyTorch-layout GRU parameters into the packed lane layout.

    w_ih_t: (E, 3H)  transpose of torch weight_ih_l0
    w_hh_t: (H, 3H)  transpose of torch weight_hh_l0
    b_ih, b_hh: (1, 3H); gate order (r, z, n) as in torch.nn.GRU.
    """
    E, threeH = w_ih_t.shape
    H = threeH // 3
    Wp = _round_up(3 * H, 128)

    w_ih_p = jnp.zeros((E, Wp), jnp.float32).at[:, :3 * H].set(w_ih_t)
    # h lives in lanes [2H:3H) -> only those rows of W_hh are nonzero.
    w_hh_p = jnp.zeros((Wp, Wp), jnp.float32).at[2 * H:3 * H, :3 * H].set(w_hh_t)
    b_gi = jnp.zeros((1, Wp), jnp.float32)
    b_gi = b_gi.at[:, :2 * H].set(b_ih[:, :2 * H] + b_hh[:, :2 * H])  # r,z folded
    b_gi = b_gi.at[:, 2 * H:3 * H].set(b_ih[:, 2 * H:3 * H])          # n: b_in only
    b_hn = jnp.zeros((1, Wp), jnp.float32).at[:, 2 * H:3 * H].set(
        b_hh[:, 2 * H:3 * H])
    return dict(w_ih=w_ih_p, w_hh=w_hh_p, b_gi=b_gi, b_hn=b_hn,
                hidden_size=H, embed_size=E, lane_width=Wp)


# ---------------------------------------------------------------------------
# Pallas wrapper
# ---------------------------------------------------------------------------
def encoder_gru_pallas(params, x_tbe, lengths, *, chunk=32, num_batch_blocks=1,
                       vmem_budget_bytes=8 * 1024 * 1024):
    """x_tbe: (T, B, E) f32; lengths: (B, 1) int32 with 1 <= len <= T.
    Returns (B, H) f32 = GRU hidden state at the last valid timestep.
    Set num_batch_blocks=2 on v7x to use both TensorCores."""
    T, B, E = x_tbe.shape
    H = params["hidden_size"]
    Wp = params["lane_width"]

    # Batch-block layout (sublane aligned).  nb > 1 only pays off on chips
    # with >1 TensorCore; on a single TC it would serialize the recurrence.
    Bp0 = _round_up(B, 8)
    nb = max(1, min(num_batch_blocks, Bp0 // 8))
    TB = _round_up((Bp0 + nb - 1) // nb, 8)
    Bp = TB * nb

    # Time-chunk TT chosen under a conservative VMEM budget (safe even for
    # v5e's 16 MiB scoped default / v7x's 64 MiB physical VMEM).
    TT = max(8, min(_round_up(chunk, 8), _round_up(T, 8)))

    def _vmem_bytes(tt):
        x_blk = 2 * tt * TB * E * 4                        # streamed x, 2 bufs
        wts = 2 * (E * Wp + Wp * Wp + 2 * Wp) * 4          # resident weights
        state = TB * Wp * 4 + 2 * TB * Wp * 4 + 2 * TB * 4  # h + out + lens
        return x_blk + wts + state

    while TT > 8 and _vmem_bytes(TT) > vmem_budget_bytes:
        TT = _round_up(TT // 2, 8)
    T_pad = _round_up(T, TT)

    # Pad activations / lengths (padded rows get length 0 -> h stays 0).
    x_p = jnp.zeros((T_pad, Bp, E), jnp.float32).at[:T, :B, :].set(x_tbe)
    len_p = jnp.zeros((Bp, 1), jnp.int32).at[:B, :].set(lengths.astype(jnp.int32))

    # Full unroll only for small batch blocks (vreg pressure otherwise).
    unroll = TT if TB <= 32 else max(1, min(8, TT))

    kernel = functools.partial(gru_kernel, hidden_size=H, unroll=unroll)

    grid_spec = pltpu.PrefetchScalarGridSpec(
        num_scalar_prefetch=0,
        grid=(Bp // TB, T_pad // TT),
        in_specs=[
            pl.BlockSpec((TT, TB, E), lambda b, c: (c, b, 0)),   # x chunk
            pl.BlockSpec((E, Wp), lambda b, c: (0, 0)),          # W_ih
            pl.BlockSpec((Wp, Wp), lambda b, c: (0, 0)),         # W_hh
            pl.BlockSpec((1, Wp), lambda b, c: (0, 0)),          # folded bias
            pl.BlockSpec((1, Wp), lambda b, c: (0, 0)),          # b_hn
            pl.BlockSpec((TB, 1), lambda b, c: (b, 0)),          # lengths
        ],
        out_specs=pl.BlockSpec((TB, Wp), lambda b, c: (b, 0)),
        scratch_shapes=[pltpu.VMEM((TB, Wp), jnp.float32)],      # hidden carry
    )

    out = pl.pallas_call(
        kernel,
        out_shape=jax.ShapeDtypeStruct((Bp, Wp), jnp.float32),
        grid_spec=grid_spec,
        compiler_params=pltpu.CompilerParams(
            # Batch blocks are independent (v7x megacore split); time is a
            # sequential recurrence.
            dimension_semantics=("parallel", "arbitrary")),
    )(x_p, params["w_ih"], params["w_hh"], params["b_gi"], params["b_hn"],
      len_p)

    # The hidden state lives in the n-gate lanes.
    return out[:B, 2 * H:3 * H]


def encoder_gru_forward(embedding, gru_params, ids, lengths, **kw):
    """ids: (B, T) int32 padded node indices; lengths: (B, 1) int32.
    Embedding gather + (B,T,E)->(T,B,E) permute done in plain XLA."""
    x_tbe = jnp.transpose(embedding[ids], (1, 0, 2)).astype(jnp.float32)
    return encoder_gru_pallas(gru_params, x_tbe, lengths, **kw)


# ---------------------------------------------------------------------------
# Pure-JAX reference (same math, for the correctness check)
# ---------------------------------------------------------------------------
def gru_reference(x_tbe, w_ih_t, w_hh_t, b_ih, b_hh, lengths):
    T, B, E = x_tbe.shape
    H = w_hh_t.shape[0]

    def step(h, x):
        gi = x @ w_ih_t + b_ih
        gh = h @ w_hh_t + b_hh
        r = jax.nn.sigmoid(gi[:, :H] + gh[:, :H])
        z = jax.nn.sigmoid(gi[:, H:2 * H] + gh[:, H:2 * H])
        n = jnp.tanh(gi[:, 2 * H:] + r * gh[:, 2 * H:])
        h_new = (1.0 - z) * n + z * h
        return h_new, h_new

    h0 = jnp.zeros((B, H), jnp.float32)
    _, hs = lax.scan(step, h0, x_tbe)               # (T, B, H)
    idx = lengths[:, 0] - 1
    return hs[idx, jnp.arange(B), :]


if __name__ == "__main__":
    # ---- module hyperparameters (small, consistent with Encoder_GRU) ----
    num_nodes = 10
    embedding_size = 32   # E
    hidden_size = 32      # H

    # ---- deterministic parameter init (synthetic; mimics nn.GRU uniform) ----
    key = jax.random.PRNGKey(0)
    k_emb, k_wih, k_whh, k_bih, k_bhh = jax.random.split(key, 5)
    bound = 1.0 / np.sqrt(hidden_size)

    embedding = jax.random.normal(k_emb, (num_nodes + 1, embedding_size),
                                  jnp.float32) * 0.1
    embedding = embedding.at[0].set(0.0)            # padding_idx=0

    # PyTorch stores weight_ih_l0 as (3H, E); we keep the transposed layout.
    w_ih_t = jax.random.uniform(k_wih, (embedding_size, 3 * hidden_size),
                                jnp.float32, -bound, bound)
    w_hh_t = jax.random.uniform(k_whh, (hidden_size, 3 * hidden_size),
                                jnp.float32, -bound, bound)
    b_ih = jax.random.uniform(k_bih, (1, 3 * hidden_size),
                              jnp.float32, -bound, bound)
    b_hh = jax.random.uniform(k_bhh, (1, 3 * hidden_size),
                              jnp.float32, -bound, bound)

    # One-time parameter repacking (hoisted out of the per-call path).
    gru_params = prepare_gru_params(w_ih_t, w_hh_t, b_ih, b_hh)

    # ---- example inputs: list of variable-length node-index sequences ----
    # TODO(synk): host-side Python-list handling / pad_sequence has no Pallas
    # equivalent; done here in numpy before the kernel.
    sequences = [[1, 2, 3], [4, 5], [6, 7, 8, 9, 1, 2], [3]]
    B = len(sequences)
    lengths_np = np.array([len(s) for s in sequences], dtype=np.int32)
    T = int(lengths_np.max())
    assert lengths_np.min() >= 1 and lengths_np.max() <= T

    padded = np.zeros((B, T), dtype=np.int32)
    for i, s in enumerate(sequences):
        padded[i, :len(s)] = s
    ids = jnp.asarray(padded)                        # (B, T) int32
    lengths = jnp.asarray(lengths_np).reshape(B, 1)  # (B, 1) int32

    out = encoder_gru_forward(embedding, gru_params, ids, lengths)
    out = jax.block_until_ready(out)

    x_tbe = jnp.transpose(embedding[ids], (1, 0, 2)).astype(jnp.float32)
    ref = gru_reference(x_tbe, w_ih_t, w_hh_t, b_ih, b_hh, lengths)
    # Tolerance allows for MXU-vs-XLA f32 matmul accumulation differences;
    # still far tighter than any layout / gate-order / bias-folding bug.
    np.testing.assert_allclose(np.asarray(out), np.asarray(ref),
                               rtol=1e-4, atol=1e-4)

    print("KERNEL_OK")
</pallas_src>

<mosaic_0001>
module attributes {stable_mosaic.version = 11 : i64} {
  func.func @gru_kernel(%arg0: i32, %arg1: i32, %arg2: memref<8x8x32xf32, #tpu.memory_space<vmem>>, %arg3: memref<32x128xf32, #tpu.memory_space<vmem>>, %arg4: memref<128x128xf32, #tpu.memory_space<vmem>>, %arg5: memref<1x128xf32, #tpu.memory_space<vmem>>, %arg6: memref<1x128xf32, #tpu.memory_space<vmem>>, %arg7: memref<8x1xi32, #tpu.memory_space<vmem>>, %arg8: memref<8x128xf32, #tpu.memory_space<vmem>>, %arg9: memref<8x128xf32, #tpu.memory_space<vmem>>) attributes {dimension_semantics = [#tpu.dimension_semantics<parallel>, #tpu.dimension_semantics<arbitrary>], iteration_bounds = array<i64: 1, 1>, scalar_prefetch = 0 : i64, scratch_operands = 1 : i64, tpu.core_type = #tpu.core_type<tc>, window_params = [{transform_indices = @transform_0, window_bounds = array<i64: 8, 8, 32>}, {pipeline_mode = #tpu.pipeline_mode<synchronous>, transform_indices = @transform_1, window_bounds = array<i64: 32, 128>}, {pipeline_mode = #tpu.pipeline_mode<synchronous>, transform_indices = @transform_2, window_bounds = array<i64: 128, 128>}, {pipeline_mode = #tpu.pipeline_mode<synchronous>, transform_indices = @transform_3, window_bounds = array<i64: 1, 128>}, {pipeline_mode = #tpu.pipeline_mode<synchronous>, transform_indices = @transform_4, window_bounds = array<i64: 1, 128>}, {transform_indices = @transform_5, window_bounds = array<i64: 8, 1>}, {transform_indices = @transform_6, window_bounds = array<i64: 8, 128>}]} {
    %c0_i32 = arith.constant 0 : i32
    %0 = arith.cmpi eq, %arg1, %c0_i32 : i32
    %1 = arith.extui %0 : i1 to i32
    %c0_i32_0 = arith.constant 0 : i32
    %2 = arith.cmpi ne, %1, %c0_i32_0 : i32
    scf.if %2 {
      %cst_71 = arith.constant 0.000000e+00 : f32
      %234 = vector.broadcast %cst_71 : f32 to vector<8x128xf32>
      %c0_72 = arith.constant 0 : index
      %c0_73 = arith.constant 0 : index
      %235 = vector.load %arg9[%c0_72, %c0_73] : memref<8x128xf32, #tpu.memory_space<vmem>>, vector<8x128xf32>
      tpu.vector_store %arg9[%c0_72, %c0_73], %234 {strides = array<i32>} : memref<8x128xf32, #tpu.memory_space<vmem>>, vector<8x128xf32>,
    } else {
    }
    %c0 = arith.constant 0 : index
    %c0_1 = arith.constant 0 : index
    %3 = vector.load %arg3[%c0, %c0_1] : memref<32x128xf32, #tpu.memory_space<vmem>>, vector<32x128xf32>
    %c0_2 = arith.constant 0 : index
    %c0_3 = arith.constant 0 : index
    %4 = vector.load %arg4[%c0_2, %c0_3] : memref<128x128xf32, #tpu.memory_space<vmem>>, vector<128x128xf32>
    %c0_4 = arith.constant 0 : index
    %c0_5 = arith.constant 0 : index
    %5 = vector.load %arg5[%c0_4, %c0_5] : memref<1x128xf32, #tpu.memory_space<vmem>>, vector<1x128xf32>
    %6 = vector.shape_cast %5 : vector<1x128xf32> to vector<1x128xf32>
    %7 = vector.broadcast %6 : vector<1x128xf32> to vector<8x128xf32>
    %c0_6 = arith.constant 0 : index
    %c0_7 = arith.constant 0 : index
    %8 = vector.load %arg6[%c0_6, %c0_7] : memref<1x128xf32, #tpu.memory_space<vmem>>, vector<1x128xf32>
    %9 = vector.shape_cast %8 : vector<1x128xf32> to vector<1x128xf32>
    %10 = vector.broadcast %9 : vector<1x128xf32> to vector<8x128xf32>
    %c0_8 = arith.constant 0 : index
    %c0_9 = arith.constant 0 : index
    %11 = vector.load %arg7[%c0_8, %c0_9] : memref<8x1xi32, #tpu.memory_space<vmem>>, vector<8x1xi32>
    %c8_i32 = arith.constant 8 : i32
    %12 = arith.muli %arg1, %c8_i32 : i32
    %c0_10 = arith.constant 0 : index
    %c0_11 = arith.constant 0 : index
    %13 = vector.load %arg9[%c0_10, %c0_11] : memref<8x128xf32, #tpu.memory_space<vmem>>, vector<8x128xf32>
    %c0_i32_12 = arith.constant 0 : i32
    %14 = arith.index_cast %c0_i32_12 : i32 to index
    %c0_13 = arith.constant 0 : index
    %c0_14 = arith.constant 0 : index
    %15 = vector.load %arg2[%14, %c0_13, %c0_14] : memref<8x8x32xf32, #tpu.memory_space<vmem>>, vector<1x8x32xf32>
    %16 = vector.shape_cast %15 : vector<1x8x32xf32> to vector<8x32xf32>
    %cst = arith.constant dense<0.000000e+00> : vector<8x128xf32>
    %17 = tpu.matmul %16, %3, %cst {dimension_numbers = #tpu.dot_dimension_numbers<[1], [0], [0], [1], [0, 0, 1, 1], [], []>} : vector<8x32xf32>, vector<32x128xf32>, vector<8x128xf32> -> vector<8x128xf32>
    %18 = arith.addf %17, %7 : vector<8x128xf32>
    %cst_15 = arith.constant dense<0.000000e+00> : vector<8x128xf32>
    %19 = tpu.matmul %13, %4, %cst_15 {dimension_numbers = #tpu.dot_dimension_numbers<[1], [0], [0], [1], [0, 0, 1, 1], [], []>} : vector<8x128xf32>, vector<128x128xf32>, vector<8x128xf32> -> vector<8x128xf32>
    %20 = arith.addf %18, %19 : vector<8x128xf32>
    %21 = arith.negf %20 : vector<8x128xf32>
    %22 = math.exp %21 : vector<8x128xf32>
    %cst_16 = arith.constant 1.000000e+00 : f32
    %23 = vector.broadcast %cst_16 : f32 to vector<8x128xf32>
    %24 = arith.addf %23, %22 : vector<8x128xf32>
    %25 = arith.divf %23, %24 : vector<8x128xf32>
    %c64_i32 = arith.constant 64 : i32
    %26 = tpu.dynamic_rotate %25 by %c64_i32 dim 1 : vector<8x128xf32>, i32 -> vector<8x128xf32>
    %27 = arith.addf %19, %10 : vector<8x128xf32>
    %28 = arith.mulf %26, %27 : vector<8x128xf32>
    %29 = arith.addf %18, %28 : vector<8x128xf32>
    %30 = math.tanh %29 : vector<8x128xf32>
    %c32_i32 = arith.constant 32 : i32
    %31 = tpu.dynamic_rotate %25 by %c32_i32 dim 1 : vector<8x128xf32>, i32 -> vector<8x128xf32>
    %32 = arith.subf %13, %30 : vector<8x128xf32>
    %33 = arith.mulf %31, %32 : vector<8x128xf32>
    %34 = arith.addf %30, %33 : vector<8x128xf32>
    %35 = arith.addi %12, %c0_i32_12 : i32
    %36 = vector.broadcast %35 : i32 to vector<8x1xi32>
    %37 = arith.cmpi slt, %36, %11 : vector<8x1xi32>
    %38 = vector.shape_cast %37 : vector<8x1xi1> to vector<8x1xi1>
    %39 = vector.broadcast %38 : vector<8x1xi1> to vector<8x128xi1>
    %40 = arith.select %39, %34, %13 : vector<8x128xi1>, vector<8x128xf32>
    %c1_i32 = arith.constant 1 : i32
    %41 = arith.index_cast %c1_i32 : i32 to index
    %c0_17 = arith.constant 0 : index
    %c0_18 = arith.constant 0 : index
    %42 = vector.load %arg2[%41, %c0_17, %c0_18] : memref<8x8x32xf32, #tpu.memory_space<vmem>>, vector<1x8x32xf32>
    %43 = vector.shape_cast %42 : vector<1x8x32xf32> to vector<8x32xf32>
    %cst_19 = arith.constant dense<0.000000e+00> : vector<8x128xf32>
    %44 = tpu.matmul %43, %3, %cst_19 {dimension_numbers = #tpu.dot_dimension_numbers<[1], [0], [0], [1], [0, 0, 1, 1], [], []>} : vector<8x32xf32>, vector<32x128xf32>, vector<8x128xf32> -> vector<8x128xf32>
    %45 = arith.addf %44, %7 : vector<8x128xf32>
    %cst_20 = arith.constant dense<0.000000e+00> : vector<8x128xf32>
    %46 = tpu.matmul %40, %4, %cst_20 {dimension_numbers = #tpu.dot_dimension_numbers<[1], [0], [0], [1], [0, 0, 1, 1], [], []>} : vector<8x128xf32>, vector<128x128xf32>, vector<8x128xf32> -> vector<8x128xf32>
    %47 = arith.addf %45, %46 : vector<8x128xf32>
    %48 = arith.negf %47 : vector<8x128xf32>
    %49 = math.exp %48 : vector<8x128xf32>
    %cst_21 = arith.constant 1.000000e+00 : f32
    %50 = vector.broadcast %cst_21 : f32 to vector<8x128xf32>
    %51 = arith.addf %50, %49 : vector<8x128xf32>
    %52 = arith.divf %50, %51 : vector<8x128xf32>
    %c64_i32_22 = arith.constant 64 : i32
    %53 = tpu.dynamic_rotate %52 by %c64_i32_22 dim 1 : vector<8x128xf32>, i32 -> vector<8x128xf32>
    %54 = arith.addf %46, %10 : vector<8x128xf32>
    %55 = arith.mulf %53, %54 : vector<8x128xf32>
    %56 = arith.addf %45, %55 : vector<8x128xf32>
    %57 = math.tanh %56 : vector<8x128xf32>
    %c32_i32_23 = arith.constant 32 : i32
    %58 = tpu.dynamic_rotate %52 by %c32_i32_23 dim 1 : vector<8x128xf32>, i32 -> vector<8x128xf32>
    %59 = arith.subf %40, %57 : vector<8x128xf32>
    %60 = arith.mulf %58, %59 : vector<8x128xf32>
    %61 = arith.addf %57, %60 : vector<8x128xf32>
    %62 = arith.addi %12, %c1_i32 : i32
    %63 = vector.broadcast %62 : i32 to vector<8x1xi32>
    %64 = arith.cmpi slt, %63, %11 : vector<8x1xi32>
    %65 = vector.shape_cast %64 : vector<8x1xi1> to vector<8x1xi1>
    %66 = vector.broadcast %65 : vector<8x1xi1> to vector<8x128xi1>
    %67 = arith.select %66, %61, %40 : vector<8x128xi1>, vector<8x128xf32>
    %c2_i32 = arith.constant 2 : i32
    %68 = arith.index_cast %c2_i32 : i32 to index
    %c0_24 = arith.constant 0 : index
    %c0_25 = arith.constant 0 : index
    %69 = vector.load %arg2[%68, %c0_24, %c0_25] : memref<8x8x32xf32, #tpu.memory_space<vmem>>, vector<1x8x32xf32>
    %70 = vector.shape_cast %69 : vector<1x8x32xf32> to vector<8x32xf32>
    %cst_26 = arith.constant dense<0.000000e+00> : vector<8x128xf32>
    %71 = tpu.matmul %70, %3, %cst_26 {dimension_numbers = #tpu.dot_dimension_numbers<[1], [0], [0], [1], [0, 0, 1, 1], [], []>} : vector<8x32xf32>, vector<32x128xf32>, vector<8x128xf32> -> vector<8x128xf32>
    %72 = arith.addf %71, %7 : vector<8x128xf32>
    %cst_27 = arith.constant dense<0.000000e+00> : vector<8x128xf32>
    %73 = tpu.matmul %67, %4, %cst_27 {dimension_numbers = #tpu.dot_dimension_numbers<[1], [0], [0], [1], [0, 0, 1, 1], [], []>} : vector<8x128xf32>, vector<128x128xf32>, vector<8x128xf32> -> vector<8x128xf32>
    %74 = arith.addf %72, %73 : vector<8x128xf32>
    %75 = arith.negf %74 : vector<8x128xf32>
    %76 = math.exp %75 : vector<8x128xf32>
    %cst_28 = arith.constant 1.000000e+00 : f32
    %77 = vector.broadcast %cst_28 : f32 to vector<8x128xf32>
    %78 = arith.addf %77, %76 : vector<8x128xf32>
    %79 = arith.divf %77, %78 : vector<8x128xf32>
    %c64_i32_29 = arith.constant 64 : i32
    %80 = tpu.dynamic_rotate %79 by %c64_i32_29 dim 1 : vector<8x128xf32>, i32 -> vector<8x128xf32>
    %81 = arith.addf %73, %10 : vector<8x128xf32>
    %82 = arith.mulf %80, %81 : vector<8x128xf32>
    %83 = arith.addf %72, %82 : vector<8x128xf32>
    %84 = math.tanh %83 : vector<8x128xf32>
    %c32_i32_30 = arith.constant 32 : i32
    %85 = tpu.dynamic_rotate %79 by %c32_i32_30 dim 1 : vector<8x128xf32>, i32 -> vector<8x128xf32>
    %86 = arith.subf %67, %84 : vector<8x128xf32>
    %87 = arith.mulf %85, %86 : vector<8x128xf32>
    %88 = arith.addf %84, %87 : vector<8x128xf32>
    %89 = arith.addi %12, %c2_i32 : i32
    %90 = vector.broadcast %89 : i32 to vector<8x1xi32>
    %91 = arith.cmpi slt, %90, %11 : vector<8x1xi32>
    %92 = vector.shape_cast %91 : vector<8x1xi1> to vector<8x1xi1>
    %93 = vector.broadcast %92 : vector<8x1xi1> to vector<8x128xi1>
    %94 = arith.select %93, %88, %67 : vector<8x128xi1>, vector<8x128xf32>
    %c3_i32 = arith.constant 3 : i32
    %95 = arith.index_cast %c3_i32 : i32 to index
    %c0_31 = arith.constant 0 : index
    %c0_32 = arith.constant 0 : index
    %96 = vector.load %arg2[%95, %c0_31, %c0_32] : memref<8x8x32xf32, #tpu.memory_space<vmem>>, vector<1x8x32xf32>
    %97 = vector.shape_cast %96 : vector<1x8x32xf32> to vector<8x32xf32>
    %cst_33 = arith.constant dense<0.000000e+00> : vector<8x128xf32>
    %98 = tpu.matmul %97, %3, %cst_33 {dimension_numbers = #tpu.dot_dimension_numbers<[1], [0], [0], [1], [0, 0, 1, 1], [], []>} : vector<8x32xf32>, vector<32x128xf32>, vector<8x128xf32> -> vector<8x128xf32>
    %99 = arith.addf %98, %7 : vector<8x128xf32>
    %cst_34 = arith.constant dense<0.000000e+00> : vector<8x128xf32>
    %100 = tpu.matmul %94, %4, %cst_34 {dimension_numbers = #tpu.dot_dimension_numbers<[1], [0], [0], [1], [0, 0, 1, 1], [], []>} : vector<8x128xf32>, vector<128x128xf32>, vector<8x128xf32> -> vector<8x128xf32>
    %101 = arith.addf %99, %100 : vector<8x128xf32>
    %102 = arith.negf %101 : vector<8x128xf32>
    %103 = math.exp %102 : vector<8x128xf32>
    %cst_35 = arith.constant 1.000000e+00 : f32
    %104 = vector.broadcast %cst_35 : f32 to vector<8x128xf32>
    %105 = arith.addf %104, %103 : vector<8x128xf32>
    %106 = arith.divf %104, %105 : vector<8x128xf32>
    %c64_i32_36 = arith.constant 64 : i32
    %107 = tpu.dynamic_rotate %106 by %c64_i32_36 dim 1 : vector<8x128xf32>, i32 -> vector<8x128xf32>
    %108 = arith.addf %100, %10 : vector<8x128xf32>
    %109 = arith.mulf %107, %108 : vector<8x128xf32>
    %110 = arith.addf %99, %109 : vector<8x128xf32>
    %111 = math.tanh %110 : vector<8x128xf32>
    %c32_i32_37 = arith.constant 32 : i32
    %112 = tpu.dynamic_rotate %106 by %c32_i32_37 dim 1 : vector<8x128xf32>, i32 -> vector<8x128xf32>
    %113 = arith.subf %94, %111 : vector<8x128xf32>
    %114 = arith.mulf %112, %113 : vector<8x128xf32>
    %115 = arith.addf %111, %114 : vector<8x128xf32>
    %116 = arith.addi %12, %c3_i32 : i32
    %117 = vector.broadcast %116 : i32 to vector<8x1xi32>
    %118 = arith.cmpi slt, %117, %11 : vector<8x1xi32>
    %119 = vector.shape_cast %118 : vector<8x1xi1> to vector<8x1xi1>
    %120 = vector.broadcast %119 : vector<8x1xi1> to vector<8x128xi1>
    %121 = arith.select %120, %115, %94 : vector<8x128xi1>, vector<8x128xf32>
    %c4_i32 = arith.constant 4 : i32
    %122 = arith.index_cast %c4_i32 : i32 to index
    %c0_38 = arith.constant 0 : index
    %c0_39 = arith.constant 0 : index
    %123 = vector.load %arg2[%122, %c0_38, %c0_39] : memref<8x8x32xf32, #tpu.memory_space<vmem>>, vector<1x8x32xf32>
    %124 = vector.shape_cast %123 : vector<1x8x32xf32> to vector<8x32xf32>
    %cst_40 = arith.constant dense<0.000000e+00> : vector<8x128xf32>
    %125 = tpu.matmul %124, %3, %cst_40 {dimension_numbers = #tpu.dot_dimension_numbers<[1], [0], [0], [1], [0, 0, 1, 1], [], []>} : vector<8x32xf32>, vector<32x128xf32>, vector<8x128xf32> -> vector<8x128xf32>
    %126 = arith.addf %125, %7 : vector<8x128xf32>
    %cst_41 = arith.constant dense<0.000000e+00> : vector<8x128xf32>
    %127 = tpu.matmul %121, %4, %cst_41 {dimension_numbers = #tpu.dot_dimension_numbers<[1], [0], [0], [1], [0, 0, 1, 1], [], []>} : vector<8x128xf32>, vector<128x128xf32>, vector<8x128xf32> -> vector<8x128xf32>
    %128 = arith.addf %126, %127 : vector<8x128xf32>
    %129 = arith.negf %128 : vector<8x128xf32>
    %130 = math.exp %129 : vector<8x128xf32>
    %cst_42 = arith.constant 1.000000e+00 : f32
    %131 = vector.broadcast %cst_42 : f32 to vector<8x128xf32>
    %132 = arith.addf %131, %130 : vector<8x128xf32>
    %133 = arith.divf %131, %132 : vector<8x128xf32>
    %c64_i32_43 = arith.constant 64 : i32
    %134 = tpu.dynamic_rotate %133 by %c64_i32_43 dim 1 : vector<8x128xf32>, i32 -> vector<8x128xf32>
    %135 = arith.addf %127, %10 : vector<8x128xf32>
    %136 = arith.mulf %134, %135 : vector<8x128xf32>
    %137 = arith.addf %126, %136 : vector<8x128xf32>
    %138 = math.tanh %137 : vector<8x128xf32>
    %c32_i32_44 = arith.constant 32 : i32
    %139 = tpu.dynamic_rotate %133 by %c32_i32_44 dim 1 : vector<8x128xf32>, i32 -> vector<8x128xf32>
    %140 = arith.subf %121, %138 : vector<8x128xf32>
    %141 = arith.mulf %139, %140 : vector<8x128xf32>
    %142 = arith.addf %138, %141 : vector<8x128xf32>
    %143 = arith.addi %12, %c4_i32 : i32
    %144 = vector.broadcast %143 : i32 to vector<8x1xi32>
    %145 = arith.cmpi slt, %144, %11 : vector<8x1xi32>
    %146 = vector.shape_cast %145 : vector<8x1xi1> to vector<8x1xi1>
    %147 = vector.broadcast %146 : vector<8x1xi1> to vector<8x128xi1>
    %148 = arith.select %147, %142, %121 : vector<8x128xi1>, vector<8x128xf32>
    %c5_i32 = arith.constant 5 : i32
    %149 = arith.index_cast %c5_i32 : i32 to index
    %c0_45 = arith.constant 0 : index
    %c0_46 = arith.constant 0 : index
    %150 = vector.load %arg2[%149, %c0_45, %c0_46] : memref<8x8x32xf32, #tpu.memory_space<vmem>>, vector<1x8x32xf32>
    %151 = vector.shape_cast %150 : vector<1x8x32xf32> to vector<8x32xf32>
    %cst_47 = arith.constant dense<0.000000e+00> : vector<8x128xf32>
    %152 = tpu.matmul %151, %3, %cst_47 {dimension_numbers = #tpu.dot_dimension_numbers<[1], [0], [0], [1], [0, 0, 1, 1], [], []>} : vector<8x32xf32>, vector<32x128xf32>, vector<8x128xf32> -> vector<8x128xf32>
    %153 = arith.addf %152, %7 : vector<8x128xf32>
    %cst_48 = arith.constant dense<0.000000e+00> : vector<8x128xf32>
    %154 = tpu.matmul %148, %4, %cst_48 {dimension_numbers = #tpu.dot_dimension_numbers<[1], [0], [0], [1], [0, 0, 1, 1], [], []>} : vector<8x128xf32>, vector<128x128xf32>, vector<8x128xf32> -> vector<8x128xf32>
    %155 = arith.addf %153, %154 : vector<8x128xf32>
    %156 = arith.negf %155 : vector<8x128xf32>
    %157 = math.exp %156 : vector<8x128xf32>
    %cst_49 = arith.constant 1.000000e+00 : f32
    %158 = vector.broadcast %cst_49 : f32 to vector<8x128xf32>
    %159 = arith.addf %158, %157 : vector<8x128xf32>
    %160 = arith.divf %158, %159 : vector<8x128xf32>
    %c64_i32_50 = arith.constant 64 : i32
    %161 = tpu.dynamic_rotate %160 by %c64_i32_50 dim 1 : vector<8x128xf32>, i32 -> vector<8x128xf32>
    %162 = arith.addf %154, %10 : vector<8x128xf32>
    %163 = arith.mulf %161, %162 : vector<8x128xf32>
    %164 = arith.addf %153, %163 : vector<8x128xf32>
    %165 = math.tanh %164 : vector<8x128xf32>
    %c32_i32_51 = arith.constant 32 : i32
    %166 = tpu.dynamic_rotate %160 by %c32_i32_51 dim 1 : vector<8x128xf32>, i32 -> vector<8x128xf32>
    %167 = arith.subf %148, %165 : vector<8x128xf32>
    %168 = arith.mulf %166, %167 : vector<8x128xf32>
    %169 = arith.addf %165, %168 : vector<8x128xf32>
    %170 = arith.addi %12, %c5_i32 : i32
    %171 = vector.broadcast %170 : i32 to vector<8x1xi32>
    %172 = arith.cmpi slt, %171, %11 : vector<8x1xi32>
    %173 = vector.shape_cast %172 : vector<8x1xi1> to vector<8x1xi1>
    %174 = vector.broadcast %173 : vector<8x1xi1> to vector<8x128xi1>
    %175 = arith.select %174, %169, %148 : vector<8x128xi1>, vector<8x128xf32>
    %c6_i32 = arith.constant 6 : i32
    %176 = arith.index_cast %c6_i32 : i32 to index
    %c0_52 = arith.constant 0 : index
    %c0_53 = arith.constant 0 : index
    %177 = vector.load %arg2[%176, %c0_52, %c0_53] : memref<8x8x32xf32, #tpu.memory_space<vmem>>, vector<1x8x32xf32>
    %178 = vector.shape_cast %177 : vector<1x8x32xf32> to vector<8x32xf32>
    %cst_54 = arith.constant dense<0.000000e+00> : vector<8x128xf32>
    %179 = tpu.matmul %178, %3, %cst_54 {dimension_numbers = #tpu.dot_dimension_numbers<[1], [0], [0], [1], [0, 0, 1, 1], [], []>} : vector<8x32xf32>, vector<32x128xf32>, vector<8x128xf32> -> vector<8x128xf32>
    %180 = arith.addf %179, %7 : vector<8x128xf32>
    %cst_55 = arith.constant dense<0.000000e+00> : vector<8x128xf32>
    %181 = tpu.matmul %175, %4, %cst_55 {dimension_numbers = #tpu.dot_dimension_numbers<[1], [0], [0], [1], [0, 0, 1, 1], [], []>} : vector<8x128xf32>, vector<128x128xf32>, vector<8x128xf32> -> vector<8x128xf32>
    %182 = arith.addf %180, %181 : vector<8x128xf32>
    %183 = arith.negf %182 : vector<8x128xf32>
    %184 = math.exp %183 : vector<8x128xf32>
    %cst_56 = arith.constant 1.000000e+00 : f32
    %185 = vector.broadcast %cst_56 : f32 to vector<8x128xf32>
    %186 = arith.addf %185, %184 : vector<8x128xf32>
    %187 = arith.divf %185, %186 : vector<8x128xf32>
    %c64_i32_57 = arith.constant 64 : i32
    %188 = tpu.dynamic_rotate %187 by %c64_i32_57 dim 1 : vector<8x128xf32>, i32 -> vector<8x128xf32>
    %189 = arith.addf %181, %10 : vector<8x128xf32>
    %190 = arith.mulf %188, %189 : vector<8x128xf32>
    %191 = arith.addf %180, %190 : vector<8x128xf32>
    %192 = math.tanh %191 : vector<8x128xf32>
    %c32_i32_58 = arith.constant 32 : i32
    %193 = tpu.dynamic_rotate %187 by %c32_i32_58 dim 1 : vector<8x128xf32>, i32 -> vector<8x128xf32>
    %194 = arith.subf %175, %192 : vector<8x128xf32>
    %195 = arith.mulf %193, %194 : vector<8x128xf32>
    %196 = arith.addf %192, %195 : vector<8x128xf32>
    %197 = arith.addi %12, %c6_i32 : i32
    %198 = vector.broadcast %197 : i32 to vector<8x1xi32>
    %199 = arith.cmpi slt, %198, %11 : vector<8x1xi32>
    %200 = vector.shape_cast %199 : vector<8x1xi1> to vector<8x1xi1>
    %201 = vector.broadcast %200 : vector<8x1xi1> to vector<8x128xi1>
    %202 = arith.select %201, %196, %175 : vector<8x128xi1>, vector<8x128xf32>
    %c7_i32 = arith.constant 7 : i32
    %203 = arith.index_cast %c7_i32 : i32 to index
    %c0_59 = arith.constant 0 : index
    %c0_60 = arith.constant 0 : index
    %204 = vector.load %arg2[%203, %c0_59, %c0_60] : memref<8x8x32xf32, #tpu.memory_space<vmem>>, vector<1x8x32xf32>
    %205 = vector.shape_cast %204 : vector<1x8x32xf32> to vector<8x32xf32>
    %cst_61 = arith.constant dense<0.000000e+00> : vector<8x128xf32>
    %206 = tpu.matmul %205, %3, %cst_61 {dimension_numbers = #tpu.dot_dimension_numbers<[1], [0], [0], [1], [0, 0, 1, 1], [], []>} : vector<8x32xf32>, vector<32x128xf32>, vector<8x128xf32> -> vector<8x128xf32>
    %207 = arith.addf %206, %7 : vector<8x128xf32>
    %cst_62 = arith.constant dense<0.000000e+00> : vector<8x128xf32>
    %208 = tpu.matmul %202, %4, %cst_62 {dimension_numbers = #tpu.dot_dimension_numbers<[1], [0], [0], [1], [0, 0, 1, 1], [], []>} : vector<8x128xf32>, vector<128x128xf32>, vector<8x128xf32> -> vector<8x128xf32>
    %209 = arith.addf %207, %208 : vector<8x128xf32>
    %210 = arith.negf %209 : vector<8x128xf32>
    %211 = math.exp %210 : vector<8x128xf32>
    %cst_63 = arith.constant 1.000000e+00 : f32
    %212 = vector.broadcast %cst_63 : f32 to vector<8x128xf32>
    %213 = arith.addf %212, %211 : vector<8x128xf32>
    %214 = arith.divf %212, %213 : vector<8x128xf32>
    %c64_i32_64 = arith.constant 64 : i32
    %215 = tpu.dynamic_rotate %214 by %c64_i32_64 dim 1 : vector<8x128xf32>, i32 -> vector<8x128xf32>
    %216 = arith.addf %208, %10 : vector<8x128xf32>
    %217 = arith.mulf %215, %216 : vector<8x128xf32>
    %218 = arith.addf %207, %217 : vector<8x128xf32>
    %219 = math.tanh %218 : vector<8x128xf32>
    %c32_i32_65 = arith.constant 32 : i32
    %220 = tpu.dynamic_rotate %214 by %c32_i32_65 dim 1 : vector<8x128xf32>, i32 -> vector<8x128xf32>
    %221 = arith.subf %202, %219 : vector<8x128xf32>
    %222 = arith.mulf %220, %221 : vector<8x128xf32>
    %223 = arith.addf %219, %222 : vector<8x128xf32>
    %224 = arith.addi %12, %c7_i32 : i32
    %225 = vector.broadcast %224 : i32 to vector<8x1xi32>
    %226 = arith.cmpi slt, %225, %11 : vector<8x1xi32>
    %227 = vector.shape_cast %226 : vector<8x1xi1> to vector<8x1xi1>
    %228 = vector.broadcast %227 : vector<8x1xi1> to vector<8x128xi1>
    %229 = arith.select %228, %223, %202 : vector<8x128xi1>, vector<8x128xf32>
    %c8_i32_66 = arith.constant 8 : i32
    %c0_67 = arith.constant 0 : index
    %c0_68 = arith.constant 0 : index
    %230 = vector.load %arg9[%c0_67, %c0_68] : memref<8x128xf32, #tpu.memory_space<vmem>>, vector<8x128xf32>
    tpu.vector_store %arg9[%c0_67, %c0_68], %229 {strides = array<i32>} : memref<8x128xf32, #tpu.memory_space<vmem>>, vector<8x128xf32>,
    %c0_i32_69 = arith.constant 0 : i32
    %231 = arith.cmpi eq, %arg1, %c0_i32_69 : i32
    %232 = arith.extui %231 : i1 to i32
    %c0_i32_70 = arith.constant 0 : i32
    %233 = arith.cmpi ne, %232, %c0_i32_70 : i32
    scf.if %233 {
      %c0_71 = arith.constant 0 : index
      %c0_72 = arith.constant 0 : index
      %234 = vector.load %arg8[%c0_71, %c0_72] : memref<8x128xf32, #tpu.memory_space<vmem>>, vector<8x128xf32>
      tpu.vector_store %arg8[%c0_71, %c0_72], %229 {strides = array<i32>} : memref<8x128xf32, #tpu.memory_space<vmem>>, vector<8x128xf32>,
    } else {
    }
    return
  }
  func.func @transform_0(%arg0: i32, %arg1: i32) -> (i32, i32, i32) {
    %c0_i32 = arith.constant 0 : i32
    %c0_i32_0 = arith.constant 0 : i32
    return %arg1, %arg0, %c0_i32 : i32, i32, i32
  }
  func.func @transform_1(%arg0: i32, %arg1: i32) -> (i32, i32) {
    %c0_i32 = arith.constant 0 : i32
    %c0_i32_0 = arith.constant 0 : i32
    %c0_i32_1 = arith.constant 0 : i32
    return %c0_i32, %c0_i32_0 : i32, i32
  }
  func.func @transform_2(%arg0: i32, %arg1: i32) -> (i32, i32) {
    %c0_i32 = arith.constant 0 : i32
    %c0_i32_0 = arith.constant 0 : i32
    %c0_i32_1 = arith.constant 0 : i32
    return %c0_i32, %c0_i32_0 : i32, i32
  }
  func.func @transform_3(%arg0: i32, %arg1: i32) -> (i32, i32) {
    %c0_i32 = arith.constant 0 : i32
    %c0_i32_0 = arith.constant 0 : i32
    %c0_i32_1 = arith.constant 0 : i32
    return %c0_i32, %c0_i32_0 : i32, i32
  }
  func.func @transform_4(%arg0: i32, %arg1: i32) -> (i32, i32) {
    %c0_i32 = arith.constant 0 : i32
    %c0_i32_0 = arith.constant 0 : i32
    %c0_i32_1 = arith.constant 0 : i32
    return %c0_i32, %c0_i32_0 : i32, i32
  }
  func.func @transform_5(%arg0: i32, %arg1: i32) -> (i32, i32) {
    %c0_i32 = arith.constant 0 : i32
    %c0_i32_0 = arith.constant 0 : i32
    return %arg0, %c0_i32 : i32, i32
  }
  func.func @transform_6(%arg0: i32, %arg1: i32) -> (i32, i32) {
    %c0_i32 = arith.constant 0 : i32
    %c0_i32_0 = arith.constant 0 : i32
    return %arg0, %c0_i32 : i32, i32
  }
}

</mosaic_0001>

<llo_original>
// kernel: tpu_custom_call.1
$region0: #{tpu_custom_call.1}
  #allocation0 [shape = 'u32[]', space=smem, size = 0x4, offset = 0x4, fixed_abs, tag = 'smem constant byte address 0x4 - core index']
  #allocation1 [shape = 'u32[144,128]{1,0:T(1,128)}', space=vmem, size = 0x12000, scoped, tag = 'internal scratch']
  #allocation2 [shape = 'f32[8,128]{1,0:T(8,128)}', space=vmem, size = 0x1000, scoped, tag = 'scratch operand']
  %s0 = inlined_call_operand.hbm [shape: f32[8,8,32], index: 0, kind: input, shape index: {}]
  %s1 = inlined_call_operand.hbm [shape: f32[32,128], index: 1, kind: input, shape index: {}]
  %s2 = inlined_call_operand.hbm [shape: f32[128,128], index: 2, kind: input, shape index: {}]
  %s3 = inlined_call_operand.vmem [shape: f32[1,128], index: 3, kind: input, shape index: {}]
  %s4 = inlined_call_operand.vmem [shape: f32[1,128], index: 4, kind: input, shape index: {}]
  %s5 = inlined_call_operand.vmem [shape: s32[8,1], index: 5, kind: input, shape index: {}]
  %s6 = inlined_call_operand.hbm [shape: f32[8,128], index: 6, kind: output, shape index: {}]
  %s7 = sld [smem:[#allocation0]]
  $region54: #{tpu_custom_call.1} parent=0
    _
  %s9 = ssub.s32 1, %s7
  %s10 = scalar_select 0, %s9, %s7
  $region1: #{tpu_custom_call.1} parent=0
    #allocation3 [shape = 'u8[32768]{0}', space=vmem, size = 0x8000, scoped, tag = 'input window, operand 0, single buffered']
    #allocation4 [shape = 's32[1]{0}', space=sflag, size = 0x4, scoped, tag = 'scoped memory for tpu_custom_call.1']
    #allocation5 [shape = 's32[1]{0}', space=sflag, size = 0x4, scoped, tag = 'scoped memory for tpu_custom_call.1']
    #allocation6 [shape = 'u8[16384]{0}', space=vmem, size = 0x4000, scoped, tag = 'input window, operand 1, single buffered']
    #allocation7 [shape = 's32[1]{0}', space=sflag, size = 0x4, scoped, tag = 'scoped memory for tpu_custom_call.1']
    #allocation8 [shape = 'u8[65536]{0}', space=vmem, size = 0x10000, scoped, tag = 'input window, operand 2, single buffered']
    #allocation9 [shape = 'u8[4096]{0}', space=vmem, size = 0x1000, scoped, tag = 'output window, operand 0, single buffered']
    %11 = vsyncpa [#allocation4], 0
    %12 = vsyncpa [#allocation7], 0
    %13 = vsyncpa [#allocation5], 0
    // Predicated region
    $region2: #{tpu_custom_call.1} parent=1 // pred_check
      _
    $region3: #{tpu_custom_call.1} parent=1 // pred_check_branch
      %15 = sbr.rel (0) target = $region5
    $region4: #{tpu_custom_call.1} parent=1 // pred_region
      %s17 = ssub.s32 1024, 1024
      %18 = vsyncadd [#allocation4], %s17
      %s19 = sshll.u32 [#allocation3], 4
      %s20 = int_to_ptr.vmem [resolvable:$true] %s19
      %25 = dma.hbm_to_vmem [thread:$0]  %s0, 1024, %s20, [#allocation4], 128, 128, 8
    $region5: #{tpu_custom_call.1} parent=1 // pred_fallthru
      _
    // Predicated region
    $region6: #{tpu_custom_call.1} parent=1 // pred_check
      _
    $region7: #{tpu_custom_call.1} parent=1 // pred_check_branch
      %27 = sbr.rel (0) target = $region9
    $region8: #{tpu_custom_call.1} parent=1 // pred_region
      %s29 = ssub.s32 512, 512
      %30 = vsyncadd [#allocation7], %s29
      %s31 = sshll.u32 [#allocation6], 4
      %s32 = int_to_ptr.vmem [resolvable:$true] %s31
      %37 = dma.hbm_to_vmem [thread:$0]  %s1, 512, %s32, [#allocation7], 128, 128, 8
    $region9: #{tpu_custom_call.1} parent=1 // pred_fallthru
      _
    // Predicated region
    $region10: #{tpu_custom_call.1} parent=1 // pred_check
      _
    $region11: #{tpu_custom_call.1} parent=1 // pred_check_branch
      %39 = sbr.rel (0) target = $region13
    $region12: #{tpu_custom_call.1} parent=1 // pred_region
      %s41 = ssub.s32 2048, 2048
      %42 = vsyncadd [#allocation7], %s41
      %s43 = sshll.u32 [#allocation8], 4
      %s44 = int_to_ptr.vmem [resolvable:$true] %s43
      %49 = dma.hbm_to_vmem [thread:$0]  %s2, 2048, %s44, [#allocation7], 128, 128, 8
    $region13: #{tpu_custom_call.1} parent=1 // pred_fallthru
      _
    // Predicated region
    $region14: #{tpu_custom_call.1} parent=1 // pred_check
      _
    $region15: #{tpu_custom_call.1} parent=1 // pred_check_branch
      %51 = sbr.rel (0) target = $region17
    $region16: #{tpu_custom_call.1} parent=1 // pred_region
      _
    $region17: #{tpu_custom_call.1} parent=1 // pred_fallthru
      _
    // Predicated region
    $region18: #{tpu_custom_call.1} parent=1 // pred_check
      _
    $region19: #{tpu_custom_call.1} parent=1 // pred_check_branch
      %53 = sbr.rel (0) target = $region21
    $region20: #{tpu_custom_call.1} parent=1 // pred_region
      _
    $region21: #{tpu_custom_call.1} parent=1 // pred_fallthru
      _
    // Predicated region
    $region22: #{tpu_custom_call.1} parent=1 // pred_check
      _
    $region23: #{tpu_custom_call.1} parent=1 // pred_check_branch
      %55 = sbr.rel (0) target = $region25
    $region24: #{tpu_custom_call.1} parent=1 // pred_region
      _
    $region25: #{tpu_custom_call.1} parent=1 // pred_fallthru
      _
    // Predicated region
    $region26: #{tpu_custom_call.1} parent=1 // pred_check
      _
    $region27: #{tpu_custom_call.1} parent=1 // pred_check_branch
      %57 = sbr.rel (0) target = $region29
    $region28: #{tpu_custom_call.1} parent=1 // pred_region
      %58 = dma.done [#allocation4], 1024
    $region29: #{tpu_custom_call.1} parent=1 // pred_fallthru
      _
    // Predicated region
    $region30: #{tpu_custom_call.1} parent=1 // pred_check
      _
    $region31: #{tpu_custom_call.1} parent=1 // pred_check_branch
      %60 = sbr.rel (0) target = $region33
    $region32: #{tpu_custom_call.1} parent=1 // pred_region
      %61 = dma.done [#allocation7], 512
    $region33: #{tpu_custom_call.1} parent=1 // pred_fallthru
      _
    // Predicated region
    $region34: #{tpu_custom_call.1} parent=1 // pred_check
      _
    $region35: #{tpu_custom_call.1} parent=1 // pred_check_branch
      %63 = sbr.rel (0) target = $region37
    $region36: #{tpu_custom_call.1} parent=1 // pred_region
      %64 = dma.done [#allocation7], 2048
    $region37: #{tpu_custom_call.1} parent=1 // pred_fallthru
      _
    %p65 = scmp.eq.s32.totalorder 0, 0
    // Predicated region
    $region38: #{tpu_custom_call.1} parent=1 // pred_check
      %p66 = pneg %p65
    $region39: #{tpu_custom_call.1} parent=1 // pred_check_branch
      %68 = sbr.rel (%p66) target = $region41
    $region40: #{tpu_custom_call.1} parent=1 // pred_region
      %69 = vst [vmem:[#allocation2] sm:$0xff] 0.0
    $region41: #{tpu_custom_call.1} parent=1 // pred_fallthru
      _
    %v70 = vld [vmem:[#allocation6] sm:$0xff]
    %v71 = vld [vmem:[#allocation6 + $0x8] sm:$0xff]
    %v72 = vld [vmem:[#allocation6 + $0x10] sm:$0xff]
    %v73 = vld [vmem:[#allocation6 + $0x18] sm:$0xff]
    %v74 = vld [vmem:[#allocation8] sm:$0xff]
    %v75 = vld [vmem:[#allocation8 + $0x8] sm:$0xff]
    %v76 = vld [vmem:[#allocation8 + $0x10] sm:$0xff]
    %v77 = vld [vmem:[#allocation8 + $0x18] sm:$0xff]
    %v78 = vld [vmem:[#allocation8 + $0x20] sm:$0xff]
    %v79 = vld [vmem:[#allocation8 + $0x28] sm:$0xff]
    %v80 = vld [vmem:[#allocation8 + $0x30] sm:$0xff]
    %v81 = vld [vmem:[#allocation8 + $0x38] sm:$0xff]
    %v82 = vld [vmem:[#allocation8 + $0x40] sm:$0xff]
    %v83 = vld [vmem:[#allocation8 + $0x48] sm:$0xff]
    %v84 = vld [vmem:[#allocation8 + $0x50] sm:$0xff]
    %v85 = vld [vmem:[#allocation8 + $0x58] sm:$0xff]
    %v86 = vld [vmem:[#allocation8 + $0x60] sm:$0xff]
    %v87 = vld [vmem:[#allocation8 + $0x68] sm:$0xff]
    %v88 = vld [vmem:[#allocation8 + $0x70] sm:$0xff]
    %v89 = vld [vmem:[#allocation8 + $0x78] sm:$0xff]
    %v90 = vld [vmem:[%s3] sm:$0x1]
    %v92 = vlaneseq
    %v93 = vshrl.u32 %v92, 7
    %v94 = vsub.s32 0, %v93
    %v95 = vrot.slane %v90, %v94
    %v97 = vld [vmem:[%s4] sm:$0x1]
    %v99 = vlaneseq
    %v100 = vshrl.u32 %v99, 7
    %v101 = vsub.s32 0, %v100
    %v102 = vrot.slane %v97, %v101
    %v104 = vld [vmem:[%s5] sm:$0xff]
    %s105 = smul.u32 0, 8
    %v106 = vld [vmem:[#allocation2] sm:$0xff]
    %v107 = vld [vmem:[#allocation3] sm:$0xff]
    %vm108 = vcmask 261120
    %v110 = vsel %vm108, %v107, 0
    %112 = vmatprep.subr.mxu0 0.0
    %113 = vmatpush1.msra.mxu0 0.0
    %114 = vmatprep.subr.mxu0 0.0
    %115 = vmatpush1.msra.mxu0 0.0
    %116 = vmatprep.subr.mxu0 0.0
    %117 = vmatpush1.msra.mxu0 0.0
    %118 = vmatprep.subr.mxu0 0.0
    %119 = vmatpush1.msra.mxu0 0.0
    %120 = vmatprep.subr.mxu0 0.0
    %121 = vmatpush1.msra.mxu0 0.0
    %122 = vmatprep.subr.mxu0 0.0
    %123 = vmatpush1.msra.mxu0 0.0
    %124 = vmatprep.subr.mxu0 0.0
    %125 = vmatpush1.msra.mxu0 0.0
    %126 = vmatprep.subr.mxu0 0.0
    %127 = vmatpush1.msra.mxu0 0.0
    %128 = vmatprep.subr.mxu0 0.0
    %129 = vmatpush1.msra.mxu0 0.0
    %130 = vmatprep.subr.mxu0 0.0
    %131 = vmatpush1.msra.mxu0 0.0
    %132 = vmatprep.subr.mxu0 0.0
    %133 = vmatpush1.msra.mxu0 0.0
    %134 = vmatprep.subr.mxu0 0.0
    %135 = vmatpush1.msra.mxu0 0.0
    %136 = vmatprep.subr.mxu0 0.0
    %137 = vmatpush1.msra.mxu0 %v73
    %138 = vmatprep.subr.mxu0 0.0
    %139 = vmatpush1.msra.mxu0 %v72
    %140 = vmatprep.subr.mxu0 0.0
    %141 = vmatpush1.msra.mxu0 %v71
    %142 = vmatprep.subr.mxu0 0.0
    %143 = vmatpush1.msra.mxu0 %v70
    %144 = vmatprep.subr.mxu0 0.0
    %145 = vmatpush2.msra.mxu0 0.0
    %146 = vmatprep.subr.mxu0 0.0
    %147 = vmatpush2.msra.mxu0 0.0
    %148 = vmatprep.subr.mxu0 0.0
    %149 = vmatpush2.msra.mxu0 0.0
    %150 = vmatprep.subr.mxu0 0.0
    %151 = vmatpush2.msra.mxu0 0.0
    %152 = vmatprep.subr.mxu0 0.0
    %153 = vmatpush2.msra.mxu0 0.0
    %154 = vmatprep.subr.mxu0 0.0
    %155 = vmatpush2.msra.mxu0 0.0
    %156 = vmatprep.subr.mxu0 0.0
    %157 = vmatpush2.msra.mxu0 0.0
    %158 = vmatprep.subr.mxu0 0.0
    %159 = vmatpush2.msra.mxu0 0.0
    %160 = vmatprep.subr.mxu0 0.0
    %161 = vmatpush2.msra.mxu0 0.0
    %162 = vmatprep.subr.mxu0 0.0
    %163 = vmatpush2.msra.mxu0 0.0
    %164 = vmatprep.subr.mxu0 0.0
    %165 = vmatpush2.msra.mxu0 0.0
    %166 = vmatprep.subr.mxu0 0.0
    %167 = vmatpush2.msra.mxu0 0.0
    %168 = vmatprep.subr.mxu0 0.0
    %169 = vmatpush2.msra.mxu0 0.0
    %170 = vmatprep.subr.mxu0 0.0
    %171 = vmatpush2.msra.mxu0 0.0
    %172 = vmatprep.subr.mxu0 0.0
    %173 = vmatpush2.msra.mxu0 0.0
    %174 = vmatprep.subr.mxu0 0.0
    %175 = vmatpush2.msra.mxu0 0.0
    %176 = vmatprep.mubr.f32.mxu0 0.0
    %177 = vmatmul.mubr.f32.gmra.mxu0 %v110
    %v178 = vpop.f32.mrf.mxu0
    %v179 = vadd.f32 %v95, %v178
    %v180 = vpop.f32.mrf.mxu0
    %181 = vdwg.mxu0
    %182 = vmatprep.subr.mxu0 0.0
    %183 = vmatpush1.msra.mxu0 %v89
    %184 = vmatprep.subr.mxu0 0.0
    %185 = vmatpush1.msra.mxu0 %v88
    %186 = vmatprep.subr.mxu0 0.0
    %187 = vmatpush1.msra.mxu0 %v87
    %188 = vmatprep.subr.mxu0 0.0
    %189 = vmatpush1.msra.mxu0 %v86
    %190 = vmatprep.subr.mxu0 0.0
    %191 = vmatpush1.msra.mxu0 %v85
    %192 = vmatprep.subr.mxu0 0.0
    %193 = vmatpush1.msra.mxu0 %v84
    %194 = vmatprep.subr.mxu0 0.0
    %195 = vmatpush1.msra.mxu0 %v83
    %196 = vmatprep.subr.mxu0 0.0
    %197 = vmatpush1.msra.mxu0 %v82
    %198 = vmatprep.subr.mxu0 0.0
    %199 = vmatpush1.msra.mxu0 %v81
    %200 = vmatprep.subr.mxu0 0.0
    %201 = vmatpush1.msra.mxu0 %v80
    %202 = vmatprep.subr.mxu0 0.0
    %203 = vmatpush1.msra.mxu0 %v79
    %204 = vmatprep.subr.mxu0 0.0
    %205 = vmatpush1.msra.mxu0 %v78
    %206 = vmatprep.subr.mxu0 0.0
    %207 = vmatpush1.msra.mxu0 %v77
    %208 = vmatprep.subr.mxu0 0.0
    %209 = vmatpush1.msra.mxu0 %v76
    %210 = vmatprep.subr.mxu0 0.0
    %211 = vmatpush1.msra.mxu0 %v75
    %212 = vmatprep.subr.mxu0 0.0
    %213 = vmatpush1.msra.mxu0 %v74
    %214 = vmatprep.subr.mxu0 0.0
    %215 = vmatpush2.msra.mxu0 0.0
    %216 = vmatprep.subr.mxu0 0.0
    %217 = vmatpush2.msra.mxu0 0.0
    %218 = vmatprep.subr.mxu0 0.0
    %219 = vmatpush2.msra.mxu0 0.0
    %220 = vmatprep.subr.mxu0 0.0
    %221 = vmatpush2.msra.mxu0 0.0
    %222 = vmatprep.subr.mxu0 0.0
    %223 = vmatpush2.msra.mxu0 0.0
    %224 = vmatprep.subr.mxu0 0.0
    %225 = vmatpush2.msra.mxu0 0.0
    %226 = vmatprep.subr.mxu0 0.0
    %227 = vmatpush2.msra.mxu0 0.0
    %228 = vmatprep.subr.mxu0 0.0
    %229 = vmatpush2.msra.mxu0 0.0
    %230 = vmatprep.subr.mxu0 0.0
    %231 = vmatpush2.msra.mxu0 0.0
    %232 = vmatprep.subr.mxu0 0.0
    %233 = vmatpush2.msra.mxu0 0.0
    %234 = vmatprep.subr.mxu0 0.0
    %235 = vmatpush2.msra.mxu0 0.0
    %236 = vmatprep.subr.mxu0 0.0
    %237 = vmatpush2.msra.mxu0 0.0
    %238 = vmatprep.subr.mxu0 0.0
    %239 = vmatpush2.msra.mxu0 0.0
    %240 = vmatprep.subr.mxu0 0.0
    %241 = vmatpush2.msra.mxu0 0.0
    %242 = vmatprep.subr.mxu0 0.0
    %243 = vmatpush2.msra.mxu0 0.0
    %244 = vmatprep.subr.mxu0 0.0
    %245 = vmatpush2.msra.mxu0 0.0
    %246 = vmatprep.mubr.f32.mxu0 0.0
    %247 = vmatmul.mubr.f32.gmra.mxu0 %v106
    %v248 = vpop.f32.mrf.mxu0
    %v249 = vadd.f32 0.0, %v248
    %v250 = vpop.f32.mrf.mxu0
    %251 = vdwg.mxu0
    %v252 = vadd.f32 %v179, %v249
    %v253 = vxor.u32 %v252, 2147483648
    %v254 = vmul.f32 %v253, 1.442695
    %v255 = vpow.pop %v254
    %v256 = vadd.f32 %v255, 1.0
    %v257 = vrcp.pop %v256
    %v258 = vmul.f32 1.0, %v257
    %259 = vrot.lane.b32.xlu0 %v258, 64
    %v260 = vpop.permute.xlu0 %259
    %v261 = vadd.f32 %v249, %v102
    %v262 = vmul.f32 %v260, %v261
    %v263 = vadd.f32 %v179, %v262
    %v264 = vtanh.pop %v263
    %265 = vrot.lane.b32.xlu0 %v258, 32
    %v266 = vpop.permute.xlu0 %265
    %v267 = vsub.f32 %v106, %v264
    %v268 = vmul.f32 %v266, %v267
    %v269 = vadd.f32 %v264, %v268
    %v270 = vstv %s105
    %vm271 = vcmp.lt.s32.totalorder %v270, %v104
    %v272 = vsel %vm271, 1, 0
    %273 = vset.pattern.permute.xlu0 0
    %274 = vperm.xlu0 %273, %v272
    %v275 = vpop.permute.xlu0 %274
    %vm276 = vcmp.eq.s32.totalorder %v275, 1
    %v277 = vsel %vm276, %v269, %v106
    %s278 = scalar_lea.vmem [#allocation3], 8
    %v279 = vld [vmem:[%s278] sm:$0xff]
    %v281 = vsel %vm108, %v279, 0
    %283 = vmatprep.subr.mxu0 0.0
    %284 = vmatpush1.msra.mxu0 0.0
    %285 = vmatprep.subr.mxu0 0.0
    %286 = vmatpush1.msra.mxu0 0.0
    %287 = vmatprep.subr.mxu0 0.0
    %288 = vmatpush1.msra.mxu0 0.0
    %289 = vmatprep.subr.mxu0 0.0
    %290 = vmatpush1.msra.mxu0 0.0
    %291 = vmatprep.subr.mxu0 0.0
    %292 = vmatpush1.msra.mxu0 0.0
    %293 = vmatprep.subr.mxu0 0.0
    %294 = vmatpush1.msra.mxu0 0.0
    %295 = vmatprep.subr.mxu0 0.0
    %296 = vmatpush1.msra.mxu0 0.0
    %297 = vmatprep.subr.mxu0 0.0
    %298 = vmatpush1.msra.mxu0 0.0
    %299 = vmatprep.subr.mxu0 0.0
    %300 = vmatpush1.msra.mxu0 0.0
    %301 = vmatprep.subr.mxu0 0.0
    %302 = vmatpush1.msra.mxu0 0.0
    %303 = vmatprep.subr.mxu0 0.0
    %304 = vmatpush1.msra.mxu0 0.0
    %305 = vmatprep.subr.mxu0 0.0
    %306 = vmatpush1.msra.mxu0 0.0
    %307 = vmatprep.subr.mxu0 0.0
    %308 = vmatpush1.msra.mxu0 %v73
    %309 = vmatprep.subr.mxu0 0.0
    %310 = vmatpush1.msra.mxu0 %v72
    %311 = vmatprep.subr.mxu0 0.0
    %312 = vmatpush1.msra.mxu0 %v71
    %313 = vmatprep.subr.mxu0 0.0
    %314 = vmatpush1.msra.mxu0 %v70
    %315 = vmatprep.subr.mxu0 0.0
    %316 = vmatpush2.msra.mxu0 0.0
    %317 = vmatprep.subr.mxu0 0.0
    %318 = vmatpush2.msra.mxu0 0.0
    %319 = vmatprep.subr.mxu0 0.0
    %320 = vmatpush2.msra.mxu0 0.0
    %321 = vmatprep.subr.mxu0 0.0
    %322 = vmatpush2.msra.mxu0 0.0
    %323 = vmatprep.subr.mxu0 0.0
    %324 = vmatpush2.msra.mxu0 0.0
    %325 = vmatprep.subr.mxu0 0.0
    %326 = vmatpush2.msra.mxu0 0.0
    %327 = vmatprep.subr.mxu0 0.0
    %328 = vmatpush2.msra.mxu0 0.0
    %329 = vmatprep.subr.mxu0 0.0
    %330 = vmatpush2.msra.mxu0 0.0
    %331 = vmatprep.subr.mxu0 0.0
    %332 = vmatpush2.msra.mxu0 0.0
    %333 = vmatprep.subr.mxu0 0.0
    %334 = vmatpush2.msra.mxu0 0.0
    %335 = vmatprep.subr.mxu0 0.0
    %336 = vmatpush2.msra.mxu0 0.0
    %337 = vmatprep.subr.mxu0 0.0
    %338 = vmatpush2.msra.mxu0 0.0
    %339 = vmatprep.subr.mxu0 0.0
    %340 = vmatpush2.msra.mxu0 0.0
    %341 = vmatprep.subr.mxu0 0.0
    %342 = vmatpush2.msra.mxu0 0.0
    %343 = vmatprep.subr.mxu0 0.0
    %344 = vmatpush2.msra.mxu0 0.0
    %345 = vmatprep.subr.mxu0 0.0
    %346 = vmatpush2.msra.mxu0 0.0
    %347 = vmatprep.mubr.f32.mxu0 0.0
    %348 = vmatmul.mubr.f32.gmra.mxu0 %v281
    %v349 = vpop.f32.mrf.mxu0
    %v350 = vadd.f32 %v95, %v349
    %v351 = vpop.f32.mrf.mxu0
    %352 = vdwg.mxu0
    %353 = vmatprep.subr.mxu0 0.0
    %354 = vmatpush1.msra.mxu0 %v89
    %355 = vmatprep.subr.mxu0 0.0
    %356 = vmatpush1.msra.mxu0 %v88
    %357 = vmatprep.subr.mxu0 0.0
    %358 = vmatpush1.msra.mxu0 %v87
    %359 = vmatprep.subr.mxu0 0.0
    %360 = vmatpush1.msra.mxu0 %v86
    %361 = vmatprep.subr.mxu0 0.0
    %362 = vmatpush1.msra.mxu0 %v85
    %363 = vmatprep.subr.mxu0 0.0
    %364 = vmatpush1.msra.mxu0 %v84
    %365 = vmatprep.subr.mxu0 0.0
    %366 = vmatpush1.msra.mxu0 %v83
    %367 = vmatprep.subr.mxu0 0.0
    %368 = vmatpush1.msra.mxu0 %v82
    %369 = vmatprep.subr.mxu0 0.0
    %370 = vmatpush1.msra.mxu0 %v81
    %371 = vmatprep.subr.mxu0 0.0
    %372 = vmatpush1.msra.mxu0 %v80
    %373 = vmatprep.subr.mxu0 0.0
    %374 = vmatpush1.msra.mxu0 %v79
    %375 = vmatprep.subr.mxu0 0.0
    %376 = vmatpush1.msra.mxu0 %v78
    %377 = vmatprep.subr.mxu0 0.0
    %378 = vmatpush1.msra.mxu0 %v77
    %379 = vmatprep.subr.mxu0 0.0
    %380 = vmatpush1.msra.mxu0 %v76
    %381 = vmatprep.subr.mxu0 0.0
    %382 = vmatpush1.msra.mxu0 %v75
    %383 = vmatprep.subr.mxu0 0.0
    %384 = vmatpush1.msra.mxu0 %v74
    %385 = vmatprep.subr.mxu0 0.0
    %386 = vmatpush2.msra.mxu0 0.0
    %387 = vmatprep.subr.mxu0 0.0
    %388 = vmatpush2.msra.mxu0 0.0
    %389 = vmatprep.subr.mxu0 0.0
    %390 = vmatpush2.msra.mxu0 0.0
    %391 = vmatprep.subr.mxu0 0.0
    %392 = vmatpush2.msra.mxu0 0.0
    %393 = vmatprep.subr.mxu0 0.0
    %394 = vmatpush2.msra.mxu0 0.0
    %395 = vmatprep.subr.mxu0 0.0
    %396 = vmatpush2.msra.mxu0 0.0
    %397 = vmatprep.subr.mxu0 0.0
    %398 = vmatpush2.msra.mxu0 0.0
    %399 = vmatprep.subr.mxu0 0.0
    %400 = vmatpush2.msra.mxu0 0.0
    %401 = vmatprep.subr.mxu0 0.0
    %402 = vmatpush2.msra.mxu0 0.0
    %403 = vmatprep.subr.mxu0 0.0
    %404 = vmatpush2.msra.mxu0 0.0
    %405 = vmatprep.subr.mxu0 0.0
    %406 = vmatpush2.msra.mxu0 0.0
    %407 = vmatprep.subr.mxu0 0.0
    %408 = vmatpush2.msra.mxu0 0.0
    %409 = vmatprep.subr.mxu0 0.0
    %410 = vmatpush2.msra.mxu0 0.0
    %411 = vmatprep.subr.mxu0 0.0
    %412 = vmatpush2.msra.mxu0 0.0
    %413 = vmatprep.subr.mxu0 0.0
    %414 = vmatpush2.msra.mxu0 0.0
    %415 = vmatprep.subr.mxu0 0.0
    %416 = vmatpush2.msra.mxu0 0.0
    %417 = vmatprep.mubr.f32.mxu0 0.0
    %418 = vmatmul.mubr.f32.gmra.mxu0 %v277
    %v419 = vpop.f32.mrf.mxu0
    %v420 = vadd.f32 0.0, %v419
    %v421 = vpop.f32.mrf.mxu0
    %422 = vdwg.mxu0
    %v423 = vadd.f32 %v350, %v420
    %v424 = vxor.u32 %v423, 2147483648
    %v425 = vmul.f32 %v424, 1.442695
    %v426 = vpow.pop %v425
    %v427 = vadd.f32 %v426, 1.0
    %v428 = vrcp.pop %v427
    %v429 = vmul.f32 1.0, %v428
    %430 = vrot.lane.b32.xlu0 %v429, 64
    %v431 = vpop.permute.xlu0 %430
    %v432 = vadd.f32 %v420, %v102
    %v433 = vmul.f32 %v431, %v432
    %v434 = vadd.f32 %v350, %v433
    %v435 = vtanh.pop %v434
    %436 = vrot.lane.b32.xlu0 %v429, 32
    %v437 = vpop.permute.xlu0 %436
    %v438 = vsub.f32 %v277, %v435
    %v439 = vmul.f32 %v437, %v438
    %v440 = vadd.f32 %v435, %v439
    %s441 = sadd.s32 %s105, 1
    %v442 = vstv %s441
    %vm443 = vcmp.lt.s32.totalorder %v442, %v104
    %v444 = vsel %vm443, 1, 0
    %445 = vset.pattern.permute.xlu0 0
    %446 = vperm.xlu0 %445, %v444
    %v447 = vpop.permute.xlu0 %446
    %vm448 = vcmp.eq.s32.totalorder %v447, 1
    %v449 = vsel %vm448, %v440, %v277
    %s450 = scalar_lea.vmem [#allocation3], 16
    %v451 = vld [vmem:[%s450] sm:$0xff]
    %v453 = vsel %vm108, %v451, 0
    %455 = vmatprep.subr.mxu0 0.0
    %456 = vmatpush1.msra.mxu0 0.0
    %457 = vmatprep.subr.mxu0 0.0
    %458 = vmatpush1.msra.mxu0 0.0
    %459 = vmatprep.subr.mxu0 0.0
    %460 = vmatpush1.msra.mxu0 0.0
    %461 = vmatprep.subr.mxu0 0.0
    %462 = vmatpush1.msra.mxu0 0.0
    %463 = vmatprep.subr.mxu0 0.0
    %464 = vmatpush1.msra.mxu0 0.0
    %465 = vmatprep.subr.mxu0 0.0
    %466 = vmatpush1.msra.mxu0 0.0
    %467 = vmatprep.subr.mxu0 0.0
    %468 = vmatpush1.msra.mxu0 0.0
    %469 = vmatprep.subr.mxu0 0.0
    %470 = vmatpush1.msra.mxu0 0.0
    %471 = vmatprep.subr.mxu0 0.0
    %472 = vmatpush1.msra.mxu0 0.0
    %473 = vmatprep.subr.mxu0 0.0
    %474 = vmatpush1.msra.mxu0 0.0
    %475 = vmatprep.subr.mxu0 0.0
    %476 = vmatpush1.msra.mxu0 0.0
    %477 = vmatprep.subr.mxu0 0.0
    %478 = vmatpush1.msra.mxu0 0.0
    %479 = vmatprep.subr.mxu0 0.0
    %480 = vmatpush1.msra.mxu0 %v73
    %481 = vmatprep.subr.mxu0 0.0
    %482 = vmatpush1.msra.mxu0 %v72
    %483 = vmatprep.subr.mxu0 0.0
    %484 = vmatpush1.msra.mxu0 %v71
    %485 = vmatprep.subr.mxu0 0.0
    %486 = vmatpush1.msra.mxu0 %v70
    %487 = vmatprep.subr.mxu0 0.0
    %488 = vmatpush2.msra.mxu0 0.0
    %489 = vmatprep.subr.mxu0 0.0
    %490 = vmatpush2.msra.mxu0 0.0
    %491 = vmatprep.subr.mxu0 0.0
    %492 = vmatpush2.msra.mxu0 0.0
    %493 = vmatprep.subr.mxu0 0.0
    %494 = vmatpush2.msra.mxu0 0.0
    %495 = vmatprep.subr.mxu0 0.0
    %496 = vmatpush2.msra.mxu0 0.0
    %497 = vmatprep.subr.mxu0 0.0
    %498 = vmatpush2.msra.mxu0 0.0
    %499 = vmatprep.subr.mxu0 0.0
    %500 = vmatpush2.msra.mxu0 0.0
    %501 = vmatprep.subr.mxu0 0.0
    %502 = vmatpush2.msra.mxu0 0.0
    %503 = vmatprep.subr.mxu0 0.0
    %504 = vmatpush2.msra.mxu0 0.0
    %505 = vmatprep.subr.mxu0 0.0
    %506 = vmatpush2.msra.mxu0 0.0
    %507 = vmatprep.subr.mxu0 0.0
    %508 = vmatpush2.msra.mxu0 0.0
    %509 = vmatprep.subr.mxu0 0.0
    %510 = vmatpush2.msra.mxu0 0.0
    %511 = vmatprep.subr.mxu0 0.0
    %512 = vmatpush2.msra.mxu0 0.0
    %513 = vmatprep.subr.mxu0 0.0
    %514 = vmatpush2.msra.mxu0 0.0
    %515 = vmatprep.subr.mxu0 0.0
    %516 = vmatpush2.msra.mxu0 0.0
    %517 = vmatprep.subr.mxu0 0.0
    %518 = vmatpush2.msra.mxu0 0.0
    %519 = vmatprep.mubr.f32.mxu0 0.0
    %520 = vmatmul.mubr.f32.gmra.mxu0 %v453
    %v521 = vpop.f32.mrf.mxu0
    %v522 = vadd.f32 %v95, %v521
    %v523 = vpop.f32.mrf.mxu0
    %524 = vdwg.mxu0
    %525 = vmatprep.subr.mxu0 0.0
    %526 = vmatpush1.msra.mxu0 %v89
    %527 = vmatprep.subr.mxu0 0.0
    %528 = vmatpush1.msra.mxu0 %v88
    %529 = vmatprep.subr.mxu0 0.0
    %530 = vmatpush1.msra.mxu0 %v87
    %531 = vmatprep.subr.mxu0 0.0
    %532 = vmatpush1.msra.mxu0 %v86
    %533 = vmatprep.subr.mxu0 0.0
    %534 = vmatpush1.msra.mxu0 %v85
    %535 = vmatprep.subr.mxu0 0.0
    %536 = vmatpush1.msra.mxu0 %v84
    %537 = vmatprep.subr.mxu0 0.0
    %538 = vmatpush1.msra.mxu0 %v83
    %539 = vmatprep.subr.mxu0 0.0
    %540 = vmatpush1.msra.mxu0 %v82
    %541 = vmatprep.subr.mxu0 0.0
    %542 = vmatpush1.msra.mxu0 %v81
    %543 = vmatprep.subr.mxu0 0.0
    %544 = vmatpush1.msra.mxu0 %v80
    %545 = vmatprep.subr.mxu0 0.0
    %546 = vmatpush1.msra.mxu0 %v79
    %547 = vmatprep.subr.mxu0 0.0
    %548 = vmatpush1.msra.mxu0 %v78
    %549 = vmatprep.subr.mxu0 0.0
    %550 = vmatpush1.msra.mxu0 %v77
    %551 = vmatprep.subr.mxu0 0.0
    %552 = vmatpush1.msra.mxu0 %v76
    %553 = vmatprep.subr.mxu0 0.0
    %554 = vmatpush1.msra.mxu0 %v75
    %555 = vmatprep.subr.mxu0 0.0
    %556 = vmatpush1.msra.mxu0 %v74
    %557 = vmatprep.subr.mxu0 0.0
    %558 = vmatpush2.msra.mxu0 0.0
    %559 = vmatprep.subr.mxu0 0.0
    %560 = vmatpush2.msra.mxu0 0.0
    %561 = vmatprep.subr.mxu0 0.0
    %562 = vmatpush2.msra.mxu0 0.0
    %563 = vmatprep.subr.mxu0 0.0
    %564 = vmatpush2.msra.mxu0 0.0
    %565 = vmatprep.subr.mxu0 0.0
    %566 = vmatpush2.msra.mxu0 0.0
    %567 = vmatprep.subr.mxu0 0.0
    %568 = vmatpush2.msra.mxu0 0.0
    %569 = vmatprep.subr.mxu0 0.0
    %570 = vmatpush2.msra.mxu0 0.0
    %571 = vmatprep.subr.mxu0 0.0
    %572 = vmatpush2.msra.mxu0 0.0
    %573 = vmatprep.subr.mxu0 0.0
    %574 = vmatpush2.msra.mxu0 0.0
    %575 = vmatprep.subr.mxu0 0.0
    %576 = vmatpush2.msra.mxu0 0.0
    %577 = vmatprep.subr.mxu0 0.0
    %578 = vmatpush2.msra.mxu0 0.0
    %579 = vmatprep.subr.mxu0 0.0
    %580 = vmatpush2.msra.mxu0 0.0
    %581 = vmatprep.subr.mxu0 0.0
    %582 = vmatpush2.msra.mxu0 0.0
    %583 = vmatprep.subr.mxu0 0.0
    %584 = vmatpush2.msra.mxu0 0.0
    %585 = vmatprep.subr.mxu0 0.0
    %586 = vmatpush2.msra.mxu0 0.0
    %587 = vmatprep.subr.mxu0 0.0
    %588 = vmatpush2.msra.mxu0 0.0
    %589 = vmatprep.mubr.f32.mxu0 0.0
    %590 = vmatmul.mubr.f32.gmra.mxu0 %v449
    %v591 = vpop.f32.mrf.mxu0
    %v592 = vadd.f32 0.0, %v591
    %v593 = vpop.f32.mrf.mxu0
    %594 = vdwg.mxu0
    %v595 = vadd.f32 %v522, %v592
    %v596 = vxor.u32 %v595, 2147483648
    %v597 = vmul.f32 %v596, 1.442695
    %v598 = vpow.pop %v597
    %v599 = vadd.f32 %v598, 1.0
    %v600 = vrcp.pop %v599
    %v601 = vmul.f32 1.0, %v600
    %602 = vrot.lane.b32.xlu0 %v601, 64
    %v603 = vpop.permute.xlu0 %602
    %v604 = vadd.f32 %v592, %v102
    %v605 = vmul.f32 %v603, %v604
    %v606 = vadd.f32 %v522, %v605
    %v607 = vtanh.pop %v606
    %608 = vrot.lane.b32.xlu0 %v601, 32
    %v609 = vpop.permute.xlu0 %608
    %v610 = vsub.f32 %v449, %v607
    %v611 = vmul.f32 %v609, %v610
    %v612 = vadd.f32 %v607, %v611
    %s613 = sadd.s32 %s105, 2
    %v614 = vstv %s613
    %vm615 = vcmp.lt.s32.totalorder %v614, %v104
    %v616 = vsel %vm615, 1, 0
    %617 = vset.pattern.permute.xlu0 0
    %618 = vperm.xlu0 %617, %v616
    %v619 = vpop.permute.xlu0 %618
    %vm620 = vcmp.eq.s32.totalorder %v619, 1
    %v621 = vsel %vm620, %v612, %v449
    %s622 = scalar_lea.vmem [#allocation3], 24
    %v623 = vld [vmem:[%s622] sm:$0xff]
    %v625 = vsel %vm108, %v623, 0
    %627 = vmatprep.subr.mxu0 0.0
    %628 = vmatpush1.msra.mxu0 0.0
    %629 = vmatprep.subr.mxu0 0.0
    %630 = vmatpush1.msra.mxu0 0.0
    %631 = vmatprep.subr.mxu0 0.0
    %632 = vmatpush1.msra.mxu0 0.0
    %633 = vmatprep.subr.mxu0 0.0
    %634 = vmatpush1.msra.mxu0 0.0
    %635 = vmatprep.subr.mxu0 0.0
    %636 = vmatpush1.msra.mxu0 0.0
    %637 = vmatprep.subr.mxu0 0.0
    %638 = vmatpush1.msra.mxu0 0.0
    %639 = vmatprep.subr.mxu0 0.0
    %640 = vmatpush1.msra.mxu0 0.0
    %641 = vmatprep.subr.mxu0 0.0
    %642 = vmatpush1.msra.mxu0 0.0
    %643 = vmatprep.subr.mxu0 0.0
    %644 = vmatpush1.msra.mxu0 0.0
    %645 = vmatprep.subr.mxu0 0.0
    %646 = vmatpush1.msra.mxu0 0.0
    %647 = vmatprep.subr.mxu0 0.0
    %648 = vmatpush1.msra.mxu0 0.0
    %649 = vmatprep.subr.mxu0 0.0
    %650 = vmatpush1.msra.mxu0 0.0
    %651 = vmatprep.subr.mxu0 0.0
    %652 = vmatpush1.msra.mxu0 %v73
    %653 = vmatprep.subr.mxu0 0.0
    %654 = vmatpush1.msra.mxu0 %v72
    %655 = vmatprep.subr.mxu0 0.0
    %656 = vmatpush1.msra.mxu0 %v71
    %657 = vmatprep.subr.mxu0 0.0
    %658 = vmatpush1.msra.mxu0 %v70
    %659 = vmatprep.subr.mxu0 0.0
    %660 = vmatpush2.msra.mxu0 0.0
    %661 = vmatprep.subr.mxu0 0.0
    %662 = vmatpush2.msra.mxu0 0.0
    %663 = vmatprep.subr.mxu0 0.0
    %664 = vmatpush2.msra.mxu0 0.0
    %665 = vmatprep.subr.mxu0 0.0
    %666 = vmatpush2.msra.mxu0 0.0
    %667 = vmatprep.subr.mxu0 0.0
    %668 = vmatpush2.msra.mxu0 0.0
    %669 = vmatprep.subr.mxu0 0.0
    %670 = vmatpush2.msra.mxu0 0.0
    %671 = vmatprep.subr.mxu0 0.0
    %672 = vmatpush2.msra.mxu0 0.0
    %673 = vmatprep.subr.mxu0 0.0
    %674 = vmatpush2.msra.mxu0 0.0
    %675 = vmatprep.subr.mxu0 0.0
    %676 = vmatpush2.msra.mxu0 0.0
    %677 = vmatprep.subr.mxu0 0.0
    %678 = vmatpush2.msra.mxu0 0.0
    %679 = vmatprep.subr.mxu0 0.0
    %680 = vmatpush2.msra.mxu0 0.0
    %681 = vmatprep.subr.mxu0 0.0
    %682 = vmatpush2.msra.mxu0 0.0
    %683 = vmatprep.subr.mxu0 0.0
    %684 = vmatpush2.msra.mxu0 0.0
    %685 = vmatprep.subr.mxu0 0.0
    %686 = vmatpush2.msra.mxu0 0.0
    %687 = vmatprep.subr.mxu0 0.0
    %688 = vmatpush2.msra.mxu0 0.0
    %689 = vmatprep.subr.mxu0 0.0
    %690 = vmatpush2.msra.mxu0 0.0
    %691 = vmatprep.mubr.f32.mxu0 0.0
    %692 = vmatmul.mubr.f32.gmra.mxu0 %v625
    %v693 = vpop.f32.mrf.mxu0
    %v694 = vadd.f32 %v95, %v693
    %v695 = vpop.f32.mrf.mxu0
    %696 = vdwg.mxu0
    %697 = vmatprep.subr.mxu0 0.0
    %698 = vmatpush1.msra.mxu0 %v89
    %699 = vmatprep.subr.mxu0 0.0
    %700 = vmatpush1.msra.mxu0 %v88
    %701 = vmatprep.subr.mxu0 0.0
    %702 = vmatpush1.msra.mxu0 %v87
    %703 = vmatprep.subr.mxu0 0.0
    %704 = vmatpush1.msra.mxu0 %v86
    %705 = vmatprep.subr.mxu0 0.0
    %706 = vmatpush1.msra.mxu0 %v85
    %707 = vmatprep.subr.mxu0 0.0
    %708 = vmatpush1.msra.mxu0 %v84
    %709 = vmatprep.subr.mxu0 0.0
    %710 = vmatpush1.msra.mxu0 %v83
    %711 = vmatprep.subr.mxu0 0.0
    %712 = vmatpush1.msra.mxu0 %v82
    %713 = vmatprep.subr.mxu0 0.0
    %714 = vmatpush1.msra.mxu0 %v81
    %715 = vmatprep.subr.mxu0 0.0
    %716 = vmatpush1.msra.mxu0 %v80
    %717 = vmatprep.subr.mxu0 0.0
    %718 = vmatpush1.msra.mxu0 %v79
    %719 = vmatprep.subr.mxu0 0.0
    %720 = vmatpush1.msra.mxu0 %v78
    %721 = vmatprep.subr.mxu0 0.0
    %722 = vmatpush1.msra.mxu0 %v77
    %723 = vmatprep.subr.mxu0 0.0
    %724 = vmatpush1.msra.mxu0 %v76
    %725 = vmatprep.subr.mxu0 0.0
    %726 = vmatpush1.msra.mxu0 %v75
    %727 = vmatprep.subr.mxu0 0.0
    %728 = vmatpush1.msra.mxu0 %v74
    %729 = vmatprep.subr.mxu0 0.0
    %730 = vmatpush2.msra.mxu0 0.0
    %731 = vmatprep.subr.mxu0 0.0
    %732 = vmatpush2.msra.mxu0 0.0
    %733 = vmatprep.subr.mxu0 0.0
    %734 = vmatpush2.msra.mxu0 0.0
    %735 = vmatprep.subr.mxu0 0.0
    %736 = vmatpush2.msra.mxu0 0.0
    %737 = vmatprep.subr.mxu0 0.0
    %738 = vmatpush2.msra.mxu0 0.0
    %739 = vmatprep.subr.mxu0 0.0
    %740 = vmatpush2.msra.mxu0 0.0
    %741 = vmatprep.subr.mxu0 0.0
    %742 = vmatpush2.msra.mxu0 0.0
    %743 = vmatprep.subr.mxu0 0.0
    %744 = vmatpush2.msra.mxu0 0.0
    %745 = vmatprep.subr.mxu0 0.0
    %746 = vmatpush2.msra.mxu0 0.0
    %747 = vmatprep.subr.mxu0 0.0
    %748 = vmatpush2.msra.mxu0 0.0
    %749 = vmatprep.subr.mxu0 0.0
    %750 = vmatpush2.msra.mxu0 0.0
    %751 = vmatprep.subr.mxu0 0.0
    %752 = vmatpush2.msra.mxu0 0.0
    %753 = vmatprep.subr.mxu0 0.0
    %754 = vmatpush2.msra.mxu0 0.0
    %755 = vmatprep.subr.mxu0 0.0
    %756 = vmatpush2.msra.mxu0 0.0
    %757 = vmatprep.subr.mxu0 0.0
    %758 = vmatpush2.msra.mxu0 0.0
    %759 = vmatprep.subr.mxu0 0.0
    %760 = vmatpush2.msra.mxu0 0.0
    %761 = vmatprep.mubr.f32.mxu0 0.0
    %762 = vmatmul.mubr.f32.gmra.mxu0 %v621
    %v763 = vpop.f32.mrf.mxu0
    %v764 = vadd.f32 0.0, %v763
    %v765 = vpop.f32.mrf.mxu0
    %766 = vdwg.mxu0
    %v767 = vadd.f32 %v694, %v764
    %v768 = vxor.u32 %v767, 2147483648
    %v769 = vmul.f32 %v768, 1.442695
    %v770 = vpow.pop %v769
    %v771 = vadd.f32 %v770, 1.0
    %v772 = vrcp.pop %v771
    %v773 = vmul.f32 1.0, %v772
    %774 = vrot.lane.b32.xlu0 %v773, 64
    %v775 = vpop.permute.xlu0 %774
    %v776 = vadd.f32 %v764, %v102
    %v777 = vmul.f32 %v775, %v776
    %v778 = vadd.f32 %v694, %v777
    %v779 = vtanh.pop %v778
    %780 = vrot.lane.b32.xlu0 %v773, 32
    %v781 = vpop.permute.xlu0 %780
    %v782 = vsub.f32 %v621, %v779
    %v783 = vmul.f32 %v781, %v782
    %v784 = vadd.f32 %v779, %v783
    %s785 = sadd.s32 %s105, 3
    %v786 = vstv %s785
    %vm787 = vcmp.lt.s32.totalorder %v786, %v104
    %v788 = vsel %vm787, 1, 0
    %789 = vset.pattern.permute.xlu0 0
    %790 = vperm.xlu0 %789, %v788
    %v791 = vpop.permute.xlu0 %790
    %vm792 = vcmp.eq.s32.totalorder %v791, 1
    %v793 = vsel %vm792, %v784, %v621
    %s794 = scalar_lea.vmem [#allocation3], 32
    %v795 = vld [vmem:[%s794] sm:$0xff]
    %v797 = vsel %vm108, %v795, 0
    %799 = vmatprep.subr.mxu0 0.0
    %800 = vmatpush1.msra.mxu0 0.0
    %801 = vmatprep.subr.mxu0 0.0
    %802 = vmatpush1.msra.mxu0 0.0
    %803 = vmatprep.subr.mxu0 0.0
    %804 = vmatpush1.msra.mxu0 0.0
    %805 = vmatprep.subr.mxu0 0.0
    %806 = vmatpush1.msra.mxu0 0.0
    %807 = vmatprep.subr.mxu0 0.0
    %808 = vmatpush1.msra.mxu0 0.0
    %809 = vmatprep.subr.mxu0 0.0
    %810 = vmatpush1.msra.mxu0 0.0
    %811 = vmatprep.subr.mxu0 0.0
    %812 = vmatpush1.msra.mxu0 0.0
    %813 = vmatprep.subr.mxu0 0.0
    %814 = vmatpush1.msra.mxu0 0.0
    %815 = vmatprep.subr.mxu0 0.0
    %816 = vmatpush1.msra.mxu0 0.0
    %817 = vmatprep.subr.mxu0 0.0
    %818 = vmatpush1.msra.mxu0 0.0
    %819 = vmatprep.subr.mxu0 0.0
    %820 = vmatpush1.msra.mxu0 0.0
    %821 = vmatprep.subr.mxu0 0.0
    %822 = vmatpush1.msra.mxu0 0.0
    %823 = vmatprep.subr.mxu0 0.0
    %824 = vmatpush1.msra.mxu0 %v73
    %825 = vmatprep.subr.mxu0 0.0
    %826 = vmatpush1.msra.mxu0 %v72
    %827 = vmatprep.subr.mxu0 0.0
    %828 = vmatpush1.msra.mxu0 %v71
    %829 = vmatprep.subr.mxu0 0.0
    %830 = vmatpush1.msra.mxu0 %v70
    %831 = vmatprep.subr.mxu0 0.0
    %832 = vmatpush2.msra.mxu0 0.0
    %833 = vmatprep.subr.mxu0 0.0
    %834 = vmatpush2.msra.mxu0 0.0
    %835 = vmatprep.subr.mxu0 0.0
    %836 = vmatpush2.msra.mxu0 0.0
    %837 = vmatprep.subr.mxu0 0.0
    %838 = vmatpush2.msra.mxu0 0.0
    %839 = vmatprep.subr.mxu0 0.0
    %840 = vmatpush2.msra.mxu0 0.0
    %841 = vmatprep.subr.mxu0 0.0
    %842 = vmatpush2.msra.mxu0 0.0
    %843 = vmatprep.subr.mxu0 0.0
    %844 = vmatpush2.msra.mxu0 0.0
    %845 = vmatprep.subr.mxu0 0.0
    %846 = vmatpush2.msra.mxu0 0.0
    %847 = vmatprep.subr.mxu0 0.0
    %848 = vmatpush2.msra.mxu0 0.0
    %849 = vmatprep.subr.mxu0 0.0
    %850 = vmatpush2.msra.mxu0 0.0
    %851 = vmatprep.subr.mxu0 0.0
    %852 = vmatpush2.msra.mxu0 0.0
    %853 = vmatprep.subr.mxu0 0.0
    %854 = vmatpush2.msra.mxu0 0.0
    %855 = vmatprep.subr.mxu0 0.0
    %856 = vmatpush2.msra.mxu0 0.0
    %857 = vmatprep.subr.mxu0 0.0
    %858 = vmatpush2.msra.mxu0 0.0
    %859 = vmatprep.subr.mxu0 0.0
    %860 = vmatpush2.msra.mxu0 0.0
    %861 = vmatprep.subr.mxu0 0.0
    %862 = vmatpush2.msra.mxu0 0.0
    %863 = vmatprep.mubr.f32.mxu0 0.0
    %864 = vmatmul.mubr.f32.gmra.mxu0 %v797
    %v865 = vpop.f32.mrf.mxu0
    %v866 = vadd.f32 %v95, %v865
    %v867 = vpop.f32.mrf.mxu0
    %868 = vdwg.mxu0
    %869 = vmatprep.subr.mxu0 0.0
    %870 = vmatpush1.msra.mxu0 %v89
    %871 = vmatprep.subr.mxu0 0.0
    %872 = vmatpush1.msra.mxu0 %v88
    %873 = vmatprep.subr.mxu0 0.0
    %874 = vmatpush1.msra.mxu0 %v87
    %875 = vmatprep.subr.mxu0 0.0
    %876 = vmatpush1.msra.mxu0 %v86
    %877 = vmatprep.subr.mxu0 0.0
    %878 = vmatpush1.msra.mxu0 %v85
    %879 = vmatprep.subr.mxu0 0.0
    %880 = vmatpush1.msra.mxu0 %v84
    %881 = vmatprep.subr.mxu0 0.0
    %882 = vmatpush1.msra.mxu0 %v83
    %883 = vmatprep.subr.mxu0 0.0
    %884 = vmatpush1.msra.mxu0 %v82
    %885 = vmatprep.subr.mxu0 0.0
    %886 = vmatpush1.msra.mxu0 %v81
    %887 = vmatprep.subr.mxu0 0.0
    %888 = vmatpush1.msra.mxu0 %v80
    %889 = vmatprep.subr.mxu0 0.0
    %890 = vmatpush1.msra.mxu0 %v79
    %891 = vmatprep.subr.mxu0 0.0
    %892 = vmatpush1.msra.mxu0 %v78
    %893 = vmatprep.subr.mxu0 0.0
    %894 = vmatpush1.msra.mxu0 %v77
    %895 = vmatprep.subr.mxu0 0.0
    %896 = vmatpush1.msra.mxu0 %v76
    %897 = vmatprep.subr.mxu0 0.0
    %898 = vmatpush1.msra.mxu0 %v75
    %899 = vmatprep.subr.mxu0 0.0
    %900 = vmatpush1.msra.mxu0 %v74
    %901 = vmatprep.subr.mxu0 0.0
    %902 = vmatpush2.msra.mxu0 0.0
    %903 = vmatprep.subr.mxu0 0.0
    %904 = vmatpush2.msra.mxu0 0.0
    %905 = vmatprep.subr.mxu0 0.0
    %906 = vmatpush2.msra.mxu0 0.0
    %907 = vmatprep.subr.mxu0 0.0
    %908 = vmatpush2.msra.mxu0 0.0
    %909 = vmatprep.subr.mxu0 0.0
    %910 = vmatpush2.msra.mxu0 0.0
    %911 = vmatprep.subr.mxu0 0.0
    %912 = vmatpush2.msra.mxu0 0.0
    %913 = vmatprep.subr.mxu0 0.0
    %914 = vmatpush2.msra.mxu0 0.0
    %915 = vmatprep.subr.mxu0 0.0
    %916 = vmatpush2.msra.mxu0 0.0
    %917 = vmatprep.subr.mxu0 0.0
    %918 = vmatpush2.msra.mxu0 0.0
    %919 = vmatprep.subr.mxu0 0.0
    %920 = vmatpush2.msra.mxu0 0.0
    %921 = vmatprep.subr.mxu0 0.0
    %922 = vmatpush2.msra.mxu0 0.0
    %923 = vmatprep.subr.mxu0 0.0
    %924 = vmatpush2.msra.mxu0 0.0
    %925 = vmatprep.subr.mxu0 0.0
    %926 = vmatpush2.msra.mxu0 0.0
    %927 = vmatprep.subr.mxu0 0.0
    %928 = vmatpush2.msra.mxu0 0.0
    %929 = vmatprep.subr.mxu0 0.0
    %930 = vmatpush2.msra.mxu0 0.0
    %931 = vmatprep.subr.mxu0 0.0
    %932 = vmatpush2.msra.mxu0 0.0
    %933 = vmatprep.mubr.f32.mxu0 0.0
    %934 = vmatmul.mubr.f32.gmra.mxu0 %v793
    %v935 = vpop.f32.mrf.mxu0
    %v936 = vadd.f32 0.0, %v935
    %v937 = vpop.f32.mrf.mxu0
    %938 = vdwg.mxu0
    %v939 = vadd.f32 %v866, %v936
    %v940 = vxor.u32 %v939, 2147483648
    %v941 = vmul.f32 %v940, 1.442695
    %v942 = vpow.pop %v941
    %v943 = vadd.f32 %v942, 1.0
    %v944 = vrcp.pop %v943
    %v945 = vmul.f32 1.0, %v944
    %946 = vrot.lane.b32.xlu0 %v945, 64
    %v947 = vpop.permute.xlu0 %946
    %v948 = vadd.f32 %v936, %v102
    %v949 = vmul.f32 %v947, %v948
    %v950 = vadd.f32 %v866, %v949
    %v951 = vtanh.pop %v950
    %952 = vrot.lane.b32.xlu0 %v945, 32
    %v953 = vpop.permute.xlu0 %952
    %v954 = vsub.f32 %v793, %v951
    %v955 = vmul.f32 %v953, %v954
    %v956 = vadd.f32 %v951, %v955
    %s957 = sadd.s32 %s105, 4
    %v958 = vstv %s957
    %vm959 = vcmp.lt.s32.totalorder %v958, %v104
    %v960 = vsel %vm959, 1, 0
    %961 = vset.pattern.permute.xlu0 0
    %962 = vperm.xlu0 %961, %v960
    %v963 = vpop.permute.xlu0 %962
    %vm964 = vcmp.eq.s32.totalorder %v963, 1
    %v965 = vsel %vm964, %v956, %v793
    %s966 = scalar_lea.vmem [#allocation3], 40
    %v967 = vld [vmem:[%s966] sm:$0xff]
    %v969 = vsel %vm108, %v967, 0
    %971 = vmatprep.subr.mxu0 0.0
    %972 = vmatpush1.msra.mxu0 0.0
    %973 = vmatprep.subr.mxu0 0.0
    %974 = vmatpush1.msra.mxu0 0.0
    %975 = vmatprep.subr.mxu0 0.0
    %976 = vmatpush1.msra.mxu0 0.0
    %977 = vmatprep.subr.mxu0 0.0
    %978 = vmatpush1.msra.mxu0 0.0
    %979 = vmatprep.subr.mxu0 0.0
    %980 = vmatpush1.msra.mxu0 0.0
    %981 = vmatprep.subr.mxu0 0.0
    %982 = vmatpush1.msra.mxu0 0.0
    %983 = vmatprep.subr.mxu0 0.0
    %984 = vmatpush1.msra.mxu0 0.0
    %985 = vmatprep.subr.mxu0 0.0
    %986 = vmatpush1.msra.mxu0 0.0
    %987 = vmatprep.subr.mxu0 0.0
    %988 = vmatpush1.msra.mxu0 0.0
    %989 = vmatprep.subr.mxu0 0.0
    %990 = vmatpush1.msra.mxu0 0.0
    %991 = vmatprep.subr.mxu0 0.0
    %992 = vmatpush1.msra.mxu0 0.0
    %993 = vmatprep.subr.mxu0 0.0
    %994 = vmatpush1.msra.mxu0 0.0
    %995 = vmatprep.subr.mxu0 0.0
    %996 = vmatpush1.msra.mxu0 %v73
    %997 = vmatprep.subr.mxu0 0.0
    %998 = vmatpush1.msra.mxu0 %v72
    %999 = vmatprep.subr.mxu0 0.0
    %1000 = vmatpush1.msra.mxu0 %v71
    %1001 = vmatprep.subr.mxu0 0.0
    %1002 = vmatpush1.msra.mxu0 %v70
    %1003 = vmatprep.subr.mxu0 0.0
    %1004 = vmatpush2.msra.mxu0 0.0
    %1005 = vmatprep.subr.mxu0 0.0
    %1006 = vmatpush2.msra.mxu0 0.0
    %1007 = vmatprep.subr.mxu0 0.0
    %1008 = vmatpush2.msra.mxu0 0.0
    %1009 = vmatprep.subr.mxu0 0.0
    %1010 = vmatpush2.msra.mxu0 0.0
    %1011 = vmatprep.subr.mxu0 0.0
    %1012 = vmatpush2.msra.mxu0 0.0
    %1013 = vmatprep.subr.mxu0 0.0
    %1014 = vmatpush2.msra.mxu0 0.0
    %1015 = vmatprep.subr.mxu0 0.0
    %1016 = vmatpush2.msra.mxu0 0.0
    %1017 = vmatprep.subr.mxu0 0.0
    %1018 = vmatpush2.msra.mxu0 0.0
    %1019 = vmatprep.subr.mxu0 0.0
    %1020 = vmatpush2.msra.mxu0 0.0
    %1021 = vmatprep.subr.mxu0 0.0
    %1022 = vmatpush2.msra.mxu0 0.0
    %1023 = vmatprep.subr.mxu0 0.0
    %1024 = vmatpush2.msra.mxu0 0.0
    %1025 = vmatprep.subr.mxu0 0.0
    %1026 = vmatpush2.msra.mxu0 0.0
    %1027 = vmatprep.subr.mxu0 0.0
    %1028 = vmatpush2.msra.mxu0 0.0
    %1029 = vmatprep.subr.mxu0 0.0
    %1030 = vmatpush2.msra.mxu0 0.0
    %1031 = vmatprep.subr.mxu0 0.0
    %1032 = vmatpush2.msra.mxu0 0.0
    %1033 = vmatprep.subr.mxu0 0.0
    %1034 = vmatpush2.msra.mxu0 0.0
    %1035 = vmatprep.mubr.f32.mxu0 0.0
    %1036 = vmatmul.mubr.f32.gmra.mxu0 %v969
    %v1037 = vpop.f32.mrf.mxu0
    %v1038 = vadd.f32 %v95, %v1037
    %v1039 = vpop.f32.mrf.mxu0
    %1040 = vdwg.mxu0
    %1041 = vmatprep.subr.mxu0 0.0
    %1042 = vmatpush1.msra.mxu0 %v89
    %1043 = vmatprep.subr.mxu0 0.0
    %1044 = vmatpush1.msra.mxu0 %v88
    %1045 = vmatprep.subr.mxu0 0.0
    %1046 = vmatpush1.msra.mxu0 %v87
    %1047 = vmatprep.subr.mxu0 0.0
    %1048 = vmatpush1.msra.mxu0 %v86
    %1049 = vmatprep.subr.mxu0 0.0
    %1050 = vmatpush1.msra.mxu0 %v85
    %1051 = vmatprep.subr.mxu0 0.0
    %1052 = vmatpush1.msra.mxu0 %v84
    %1053 = vmatprep.subr.mxu0 0.0
    %1054 = vmatpush1.msra.mxu0 %v83
    %1055 = vmatprep.subr.mxu0 0.0
    %1056 = vmatpush1.msra.mxu0 %v82
    %1057 = vmatprep.subr.mxu0 0.0
    %1058 = vmatpush1.msra.mxu0 %v81
    %1059 = vmatprep.subr.mxu0 0.0
    %1060 = vmatpush1.msra.mxu0 %v80
    %1061 = vmatprep.subr.mxu0 0.0
    %1062 = vmatpush1.msra.mxu0 %v79
    %1063 = vmatprep.subr.mxu0 0.0
    %1064 = vmatpush1.msra.mxu0 %v78
    %1065 = vmatprep.subr.mxu0 0.0
    %1066 = vmatpush1.msra.mxu0 %v77
    %1067 = vmatprep.subr.mxu0 0.0
    %1068 = vmatpush1.msra.mxu0 %v76
    %1069 = vmatprep.subr.mxu0 0.0
    %1070 = vmatpush1.msra.mxu0 %v75
    %1071 = vmatprep.subr.mxu0 0.0
    %1072 = vmatpush1.msra.mxu0 %v74
    %1073 = vmatprep.subr.mxu0 0.0
    %1074 = vmatpush2.msra.mxu0 0.0
    %1075 = vmatprep.subr.mxu0 0.0
    %1076 = vmatpush2.msra.mxu0 0.0
    %1077 = vmatprep.subr.mxu0 0.0
    %1078 = vmatpush2.msra.mxu0 0.0
    %1079 = vmatprep.subr.mxu0 0.0
    %1080 = vmatpush2.msra.mxu0 0.0
    %1081 = vmatprep.subr.mxu0 0.0
    %1082 = vmatpush2.msra.mxu0 0.0
    %1083 = vmatprep.subr.mxu0 0.0
    %1084 = vmatpush2.msra.mxu0 0.0
    %1085 = vmatprep.subr.mxu0 0.0
    %1086 = vmatpush2.msra.mxu0 0.0
    %1087 = vmatprep.subr.mxu0 0.0
    %1088 = vmatpush2.msra.mxu0 0.0
    %1089 = vmatprep.subr.mxu0 0.0
    %1090 = vmatpush2.msra.mxu0 0.0
    %1091 = vmatprep.subr.mxu0 0.0
    %1092 = vmatpush2.msra.mxu0 0.0
    %1093 = vmatprep.subr.mxu0 0.0
    %1094 = vmatpush2.msra.mxu0 0.0
    %1095 = vmatprep.subr.mxu0 0.0
    %1096 = vmatpush2.msra.mxu0 0.0
    %1097 = vmatprep.subr.mxu0 0.0
    %1098 = vmatpush2.msra.mxu0 0.0
    %1099 = vmatprep.subr.mxu0 0.0
    %1100 = vmatpush2.msra.mxu0 0.0
    %1101 = vmatprep.subr.mxu0 0.0
    %1102 = vmatpush2.msra.mxu0 0.0
    %1103 = vmatprep.subr.mxu0 0.0
    %1104 = vmatpush2.msra.mxu0 0.0
    %1105 = vmatprep.mubr.f32.mxu0 0.0
    %1106 = vmatmul.mubr.f32.gmra.mxu0 %v965
    %v1107 = vpop.f32.mrf.mxu0
    %v1108 = vadd.f32 0.0, %v1107
    %v1109 = vpop.f32.mrf.mxu0
    %1110 = vdwg.mxu0
    %v1111 = vadd.f32 %v1038, %v1108
    %v1112 = vxor.u32 %v1111, 2147483648
    %v1113 = vmul.f32 %v1112, 1.442695
    %v1114 = vpow.pop %v1113
    %v1115 = vadd.f32 %v1114, 1.0
    %v1116 = vrcp.pop %v1115
    %v1117 = vmul.f32 1.0, %v1116
    %1118 = vrot.lane.b32.xlu0 %v1117, 64
    %v1119 = vpop.permute.xlu0 %1118
    %v1120 = vadd.f32 %v1108, %v102
    %v1121 = vmul.f32 %v1119, %v1120
    %v1122 = vadd.f32 %v1038, %v1121
    %v1123 = vtanh.pop %v1122
    %1124 = vrot.lane.b32.xlu0 %v1117, 32
    %v1125 = vpop.permute.xlu0 %1124
    %v1126 = vsub.f32 %v965, %v1123
    %v1127 = vmul.f32 %v1125, %v1126
    %v1128 = vadd.f32 %v1123, %v1127
    %s1129 = sadd.s32 %s105, 5
    %v1130 = vstv %s1129
    %vm1131 = vcmp.lt.s32.totalorder %v1130, %v104
    %v1132 = vsel %vm1131, 1, 0
    %1133 = vset.pattern.permute.xlu0 0
    %1134 = vperm.xlu0 %1133, %v1132
    %v1135 = vpop.permute.xlu0 %1134
    %vm1136 = vcmp.eq.s32.totalorder %v1135, 1
    %v1137 = vsel %vm1136, %v1128, %v965
    %s1138 = scalar_lea.vmem [#allocation3], 48
    %v1139 = vld [vmem:[%s1138] sm:$0xff]
    %v1141 = vsel %vm108, %v1139, 0
    %1143 = vmatprep.subr.mxu0 0.0
    %1144 = vmatpush1.msra.mxu0 0.0
    %1145 = vmatprep.subr.mxu0 0.0
    %1146 = vmatpush1.msra.mxu0 0.0
    %1147 = vmatprep.subr.mxu0 0.0
    %1148 = vmatpush1.msra.mxu0 0.0
    %1149 = vmatprep.subr.mxu0 0.0
    %1150 = vmatpush1.msra.mxu0 0.0
    %1151 = vmatprep.subr.mxu0 0.0
    %1152 = vmatpush1.msra.mxu0 0.0
    %1153 = vmatprep.subr.mxu0 0.0
    %1154 = vmatpush1.msra.mxu0 0.0
    %1155 = vmatprep.subr.mxu0 0.0
    %1156 = vmatpush1.msra.mxu0 0.0
    %1157 = vmatprep.subr.mxu0 0.0
    %1158 = vmatpush1.msra.mxu0 0.0
    %1159 = vmatprep.subr.mxu0 0.0
    %1160 = vmatpush1.msra.mxu0 0.0
    %1161 = vmatprep.subr.mxu0 0.0
    %1162 = vmatpush1.msra.mxu0 0.0
    %1163 = vmatprep.subr.mxu0 0.0
    %1164 = vmatpush1.msra.mxu0 0.0
    %1165 = vmatprep.subr.mxu0 0.0
    %1166 = vmatpush1.msra.mxu0 0.0
    %1167 = vmatprep.subr.mxu0 0.0
    %1168 = vmatpush1.msra.mxu0 %v73
    %1169 = vmatprep.subr.mxu0 0.0
    %1170 = vmatpush1.msra.mxu0 %v72
    %1171 = vmatprep.subr.mxu0 0.0
    %1172 = vmatpush1.msra.mxu0 %v71
    %1173 = vmatprep.subr.mxu0 0.0
    %1174 = vmatpush1.msra.mxu0 %v70
    %1175 = vmatprep.subr.mxu0 0.0
    %1176 = vmatpush2.msra.mxu0 0.0
    %1177 = vmatprep.subr.mxu0 0.0
    %1178 = vmatpush2.msra.mxu0 0.0
    %1179 = vmatprep.subr.mxu0 0.0
    %1180 = vmatpush2.msra.mxu0 0.0
    %1181 = vmatprep.subr.mxu0 0.0
    %1182 = vmatpush2.msra.mxu0 0.0
    %1183 = vmatprep.subr.mxu0 0.0
    %1184 = vmatpush2.msra.mxu0 0.0
    %1185 = vmatprep.subr.mxu0 0.0
    %1186 = vmatpush2.msra.mxu0 0.0
    %1187 = vmatprep.subr.mxu0 0.0
    %1188 = vmatpush2.msra.mxu0 0.0
    %1189 = vmatprep.subr.mxu0 0.0
    %1190 = vmatpush2.msra.mxu0 0.0
    %1191 = vmatprep.subr.mxu0 0.0
    %1192 = vmatpush2.msra.mxu0 0.0
    %1193 = vmatprep.subr.mxu0 0.0
    %1194 = vmatpush2.msra.mxu0 0.0
    %1195 = vmatprep.subr.mxu0 0.0
    %1196 = vmatpush2.msra.mxu0 0.0
    %1197 = vmatprep.subr.mxu0 0.0
    %1198 = vmatpush2.msra.mxu0 0.0
    %1199 = vmatprep.subr.mxu0 0.0
    %1200 = vmatpush2.msra.mxu0 0.0
    %1201 = vmatprep.subr.mxu0 0.0
    %1202 = vmatpush2.msra.mxu0 0.0
    %1203 = vmatprep.subr.mxu0 0.0
    %1204 = vmatpush2.msra.mxu0 0.0
    %1205 = vmatprep.subr.mxu0 0.0
    %1206 = vmatpush2.msra.mxu0 0.0
    %1207 = vmatprep.mubr.f32.mxu0 0.0
    %1208 = vmatmul.mubr.f32.gmra.mxu0 %v1141
    %v1209 = vpop.f32.mrf.mxu0
    %v1210 = vadd.f32 %v95, %v1209
    %v1211 = vpop.f32.mrf.mxu0
    %1212 = vdwg.mxu0
    %1213 = vmatprep.subr.mxu0 0.0
    %1214 = vmatpush1.msra.mxu0 %v89
    %1215 = vmatprep.subr.mxu0 0.0
    %1216 = vmatpush1.msra.mxu0 %v88
    %1217 = vmatprep.subr.mxu0 0.0
    %1218 = vmatpush1.msra.mxu0 %v87
    %1219 = vmatprep.subr.mxu0 0.0
    %1220 = vmatpush1.msra.mxu0 %v86
    %1221 = vmatprep.subr.mxu0 0.0
    %1222 = vmatpush1.msra.mxu0 %v85
    %1223 = vmatprep.subr.mxu0 0.0
    %1224 = vmatpush1.msra.mxu0 %v84
    %1225 = vmatprep.subr.mxu0 0.0
    %1226 = vmatpush1.msra.mxu0 %v83
    %1227 = vmatprep.subr.mxu0 0.0
    %1228 = vmatpush1.msra.mxu0 %v82
    %1229 = vmatprep.subr.mxu0 0.0
    %1230 = vmatpush1.msra.mxu0 %v81
    %1231 = vmatprep.subr.mxu0 0.0
    %1232 = vmatpush1.msra.mxu0 %v80
    %1233 = vmatprep.subr.mxu0 0.0
    %1234 = vmatpush1.msra.mxu0 %v79
    %1235 = vmatprep.subr.mxu0 0.0
    %1236 = vmatpush1.msra.mxu0 %v78
    %1237 = vmatprep.subr.mxu0 0.0
    %1238 = vmatpush1.msra.mxu0 %v77
    %1239 = vmatprep.subr.mxu0 0.0
    %1240 = vmatpush1.msra.mxu0 %v76
    %1241 = vmatprep.subr.mxu0 0.0
    %1242 = vmatpush1.msra.mxu0 %v75
    %1243 = vmatprep.subr.mxu0 0.0
    %1244 = vmatpush1.msra.mxu0 %v74
    %1245 = vmatprep.subr.mxu0 0.0
    %1246 = vmatpush2.msra.mxu0 0.0
    %1247 = vmatprep.subr.mxu0 0.0
    %1248 = vmatpush2.msra.mxu0 0.0
    %1249 = vmatprep.subr.mxu0 0.0
    %1250 = vmatpush2.msra.mxu0 0.0
    %1251 = vmatprep.subr.mxu0 0.0
    %1252 = vmatpush2.msra.mxu0 0.0
    %1253 = vmatprep.subr.mxu0 0.0
    %1254 = vmatpush2.msra.mxu0 0.0
    %1255 = vmatprep.subr.mxu0 0.0
    %1256 = vmatpush2.msra.mxu0 0.0
    %1257 = vmatprep.subr.mxu0 0.0
    %1258 = vmatpush2.msra.mxu0 0.0
    %1259 = vmatprep.subr.mxu0 0.0
    %1260 = vmatpush2.msra.mxu0 0.0
    %1261 = vmatprep.subr.mxu0 0.0
    %1262 = vmatpush2.msra.mxu0 0.0
    %1263 = vmatprep.subr.mxu0 0.0
    %1264 = vmatpush2.msra.mxu0 0.0
    %1265 = vmatprep.subr.mxu0 0.0
    %1266 = vmatpush2.msra.mxu0 0.0
    %1267 = vmatprep.subr.mxu0 0.0
    %1268 = vmatpush2.msra.mxu0 0.0
    %1269 = vmatprep.subr.mxu0 0.0
    %1270 = vmatpush2.msra.mxu0 0.0
    %1271 = vmatprep.subr.mxu0 0.0
    %1272 = vmatpush2.msra.mxu0 0.0
    %1273 = vmatprep.subr.mxu0 0.0
    %1274 = vmatpush2.msra.mxu0 0.0
    %1275 = vmatprep.subr.mxu0 0.0
    %1276 = vmatpush2.msra.mxu0 0.0
    %1277 = vmatprep.mubr.f32.mxu0 0.0
    %1278 = vmatmul.mubr.f32.gmra.mxu0 %v1137
    %v1279 = vpop.f32.mrf.mxu0
    %v1280 = vadd.f32 0.0, %v1279
    %v1281 = vpop.f32.mrf.mxu0
    %1282 = vdwg.mxu0
    %v1283 = vadd.f32 %v1210, %v1280
    %v1284 = vxor.u32 %v1283, 2147483648
    %v1285 = vmul.f32 %v1284, 1.442695
    %v1286 = vpow.pop %v1285
    %v1287 = vadd.f32 %v1286, 1.0
    %v1288 = vrcp.pop %v1287
    %v1289 = vmul.f32 1.0, %v1288
    %1290 = vrot.lane.b32.xlu0 %v1289, 64
    %v1291 = vpop.permute.xlu0 %1290
    %v1292 = vadd.f32 %v1280, %v102
    %v1293 = vmul.f32 %v1291, %v1292
    %v1294 = vadd.f32 %v1210, %v1293
    %v1295 = vtanh.pop %v1294
    %1296 = vrot.lane.b32.xlu0 %v1289, 32
    %v1297 = vpop.permute.xlu0 %1296
    %v1298 = vsub.f32 %v1137, %v1295
    %v1299 = vmul.f32 %v1297, %v1298
    %v1300 = vadd.f32 %v1295, %v1299
    %s1301 = sadd.s32 %s105, 6
    %v1302 = vstv %s1301
    %vm1303 = vcmp.lt.s32.totalorder %v1302, %v104
    %v1304 = vsel %vm1303, 1, 0
    %1305 = vset.pattern.permute.xlu0 0
    %1306 = vperm.xlu0 %1305, %v1304
    %v1307 = vpop.permute.xlu0 %1306
    %vm1308 = vcmp.eq.s32.totalorder %v1307, 1
    %v1309 = vsel %vm1308, %v1300, %v1137
    %s1310 = scalar_lea.vmem [#allocation3], 56
    %v1311 = vld [vmem:[%s1310] sm:$0xff]
    %v1313 = vsel %vm108, %v1311, 0
    %1315 = vmatprep.subr.mxu0 0.0
    %1316 = vmatpush1.msra.mxu0 0.0
    %1317 = vmatprep.subr.mxu0 0.0
    %1318 = vmatpush1.msra.mxu0 0.0
    %1319 = vmatprep.subr.mxu0 0.0
    %1320 = vmatpush1.msra.mxu0 0.0
    %1321 = vmatprep.subr.mxu0 0.0
    %1322 = vmatpush1.msra.mxu0 0.0
    %1323 = vmatprep.subr.mxu0 0.0
    %1324 = vmatpush1.msra.mxu0 0.0
    %1325 = vmatprep.subr.mxu0 0.0
    %1326 = vmatpush1.msra.mxu0 0.0
    %1327 = vmatprep.subr.mxu0 0.0
    %1328 = vmatpush1.msra.mxu0 0.0
    %1329 = vmatprep.subr.mxu0 0.0
    %1330 = vmatpush1.msra.mxu0 0.0
    %1331 = vmatprep.subr.mxu0 0.0
    %1332 = vmatpush1.msra.mxu0 0.0
    %1333 = vmatprep.subr.mxu0 0.0
    %1334 = vmatpush1.msra.mxu0 0.0
    %1335 = vmatprep.subr.mxu0 0.0
    %1336 = vmatpush1.msra.mxu0 0.0
    %1337 = vmatprep.subr.mxu0 0.0
    %1338 = vmatpush1.msra.mxu0 0.0
    %1339 = vmatprep.subr.mxu0 0.0
    %1340 = vmatpush1.msra.mxu0 %v73
    %1341 = vmatprep.subr.mxu0 0.0
    %1342 = vmatpush1.msra.mxu0 %v72
    %1343 = vmatprep.subr.mxu0 0.0
    %1344 = vmatpush1.msra.mxu0 %v71
    %1345 = vmatprep.subr.mxu0 0.0
    %1346 = vmatpush1.msra.mxu0 %v70
    %1347 = vmatprep.subr.mxu0 0.0
    %1348 = vmatpush2.msra.mxu0 0.0
    %1349 = vmatprep.subr.mxu0 0.0
    %1350 = vmatpush2.msra.mxu0 0.0
    %1351 = vmatprep.subr.mxu0 0.0
    %1352 = vmatpush2.msra.mxu0 0.0
    %1353 = vmatprep.subr.mxu0 0.0
    %1354 = vmatpush2.msra.mxu0 0.0
    %1355 = vmatprep.subr.mxu0 0.0
    %1356 = vmatpush2.msra.mxu0 0.0
    %1357 = vmatprep.subr.mxu0 0.0
    %1358 = vmatpush2.msra.mxu0 0.0
    %1359 = vmatprep.subr.mxu0 0.0
    %1360 = vmatpush2.msra.mxu0 0.0
    %1361 = vmatprep.subr.mxu0 0.0
    %1362 = vmatpush2.msra.mxu0 0.0
    %1363 = vmatprep.subr.mxu0 0.0
    %1364 = vmatpush2.msra.mxu0 0.0
    %1365 = vmatprep.subr.mxu0 0.0
    %1366 = vmatpush2.msra.mxu0 0.0
    %1367 = vmatprep.subr.mxu0 0.0
    %1368 = vmatpush2.msra.mxu0 0.0
    %1369 = vmatprep.subr.mxu0 0.0
    %1370 = vmatpush2.msra.mxu0 0.0
    %1371 = vmatprep.subr.mxu0 0.0
    %1372 = vmatpush2.msra.mxu0 0.0
    %1373 = vmatprep.subr.mxu0 0.0
    %1374 = vmatpush2.msra.mxu0 0.0
    %1375 = vmatprep.subr.mxu0 0.0
    %1376 = vmatpush2.msra.mxu0 0.0
    %1377 = vmatprep.subr.mxu0 0.0
    %1378 = vmatpush2.msra.mxu0 0.0
    %1379 = vmatprep.mubr.f32.mxu0 0.0
    %1380 = vmatmul.mubr.f32.gmra.mxu0 %v1313
    %v1381 = vpop.f32.mrf.mxu0
    %v1382 = vadd.f32 %v95, %v1381
    %v1383 = vpop.f32.mrf.mxu0
    %1384 = vdwg.mxu0
    %1385 = vmatprep.subr.mxu0 0.0
    %1386 = vmatpush1.msra.mxu0 %v89
    %1387 = vmatprep.subr.mxu0 0.0
    %1388 = vmatpush1.msra.mxu0 %v88
    %1389 = vmatprep.subr.mxu0 0.0
    %1390 = vmatpush1.msra.mxu0 %v87
    %1391 = vmatprep.subr.mxu0 0.0
    %1392 = vmatpush1.msra.mxu0 %v86
    %1393 = vmatprep.subr.mxu0 0.0
    %1394 = vmatpush1.msra.mxu0 %v85
    %1395 = vmatprep.subr.mxu0 0.0
    %1396 = vmatpush1.msra.mxu0 %v84
    %1397 = vmatprep.subr.mxu0 0.0
    %1398 = vmatpush1.msra.mxu0 %v83
    %1399 = vmatprep.subr.mxu0 0.0
    %1400 = vmatpush1.msra.mxu0 %v82
    %1401 = vmatprep.subr.mxu0 0.0
    %1402 = vmatpush1.msra.mxu0 %v81
    %1403 = vmatprep.subr.mxu0 0.0
    %1404 = vmatpush1.msra.mxu0 %v80
    %1405 = vmatprep.subr.mxu0 0.0
    %1406 = vmatpush1.msra.mxu0 %v79
    %1407 = vmatprep.subr.mxu0 0.0
    %1408 = vmatpush1.msra.mxu0 %v78
    %1409 = vmatprep.subr.mxu0 0.0
    %1410 = vmatpush1.msra.mxu0 %v77
    %1411 = vmatprep.subr.mxu0 0.0
    %1412 = vmatpush1.msra.mxu0 %v76
    %1413 = vmatprep.subr.mxu0 0.0
    %1414 = vmatpush1.msra.mxu0 %v75
    %1415 = vmatprep.subr.mxu0 0.0
    %1416 = vmatpush1.msra.mxu0 %v74
    %1417 = vmatprep.subr.mxu0 0.0
    %1418 = vmatpush2.msra.mxu0 0.0
    %1419 = vmatprep.subr.mxu0 0.0
    %1420 = vmatpush2.msra.mxu0 0.0
    %1421 = vmatprep.subr.mxu0 0.0
    %1422 = vmatpush2.msra.mxu0 0.0
    %1423 = vmatprep.subr.mxu0 0.0
    %1424 = vmatpush2.msra.mxu0 0.0
    %1425 = vmatprep.subr.mxu0 0.0
    %1426 = vmatpush2.msra.mxu0 0.0
    %1427 = vmatprep.subr.mxu0 0.0
    %1428 = vmatpush2.msra.mxu0 0.0
    %1429 = vmatprep.subr.mxu0 0.0
    %1430 = vmatpush2.msra.mxu0 0.0
    %1431 = vmatprep.subr.mxu0 0.0
    %1432 = vmatpush2.msra.mxu0 0.0
    %1433 = vmatprep.subr.mxu0 0.0
    %1434 = vmatpush2.msra.mxu0 0.0
    %1435 = vmatprep.subr.mxu0 0.0
    %1436 = vmatpush2.msra.mxu0 0.0
    %1437 = vmatprep.subr.mxu0 0.0
    %1438 = vmatpush2.msra.mxu0 0.0
    %1439 = vmatprep.subr.mxu0 0.0
    %1440 = vmatpush2.msra.mxu0 0.0
    %1441 = vmatprep.subr.mxu0 0.0
    %1442 = vmatpush2.msra.mxu0 0.0
    %1443 = vmatprep.subr.mxu0 0.0
    %1444 = vmatpush2.msra.mxu0 0.0
    %1445 = vmatprep.subr.mxu0 0.0
    %1446 = vmatpush2.msra.mxu0 0.0
    %1447 = vmatprep.subr.mxu0 0.0
    %1448 = vmatpush2.msra.mxu0 0.0
    %1449 = vmatprep.mubr.f32.mxu0 0.0
    %1450 = vmatmul.mubr.f32.gmra.mxu0 %v1309
    %v1451 = vpop.f32.mrf.mxu0
    %v1452 = vadd.f32 0.0, %v1451
    %v1453 = vpop.f32.mrf.mxu0
    %1454 = vdwg.mxu0
    %v1455 = vadd.f32 %v1382, %v1452
    %v1456 = vxor.u32 %v1455, 2147483648
    %v1457 = vmul.f32 %v1456, 1.442695
    %v1458 = vpow.pop %v1457
    %v1459 = vadd.f32 %v1458, 1.0
    %v1460 = vrcp.pop %v1459
    %v1461 = vmul.f32 1.0, %v1460
    %1462 = vrot.lane.b32.xlu0 %v1461, 64
    %v1463 = vpop.permute.xlu0 %1462
    %v1464 = vadd.f32 %v1452, %v102
    %v1465 = vmul.f32 %v1463, %v1464
    %v1466 = vadd.f32 %v1382, %v1465
    %v1467 = vtanh.pop %v1466
    %1468 = vrot.lane.b32.xlu0 %v1461, 32
    %v1469 = vpop.permute.xlu0 %1468
    %v1470 = vsub.f32 %v1309, %v1467
    %v1471 = vmul.f32 %v1469, %v1470
    %v1472 = vadd.f32 %v1467, %v1471
    %s1473 = sadd.s32 %s105, 7
    %v1474 = vstv %s1473
    %vm1475 = vcmp.lt.s32.totalorder %v1474, %v104
    %v1476 = vsel %vm1475, 1, 0
    %1477 = vset.pattern.permute.xlu0 0
    %1478 = vperm.xlu0 %1477, %v1476
    %v1479 = vpop.permute.xlu0 %1478
    %vm1480 = vcmp.eq.s32.totalorder %v1479, 1
    %v1481 = vsel %vm1480, %v1472, %v1309
    %1482 = vst [vmem:[#allocation2] sm:$0xff] %v1481
    // Predicated region
    $region42: #{tpu_custom_call.1} parent=1 // pred_check
      %p1483 = pneg %p65
    $region43: #{tpu_custom_call.1} parent=1 // pred_check_branch
      %1485 = sbr.rel (%p1483) target = $region45
    $region44: #{tpu_custom_call.1} parent=1 // pred_region
      %1486 = vst [vmem:[#allocation9] sm:$0xff] %v1481
    $region45: #{tpu_custom_call.1} parent=1 // pred_fallthru
      _
    // Predicated region
    $region46: #{tpu_custom_call.1} parent=1 // pred_check
      _
    $region47: #{tpu_custom_call.1} parent=1 // pred_check_branch
      %1488 = sbr.rel (0) target = $region49
    $region48: #{tpu_custom_call.1} parent=1 // pred_region
      %s1490 = ssub.s32 128, 128
      %1491 = vsyncadd [#allocation5], %s1490
      %s1493 = sshll.u32 [#allocation9], 4
      %s1494 = int_to_ptr.vmem [resolvable:$true] %s1493
      %1496 = dma.vmem_to_hbm [thread:$0]  %s1494, 128, %s6, [#allocation5]
    $region49: #{tpu_custom_call.1} parent=1 // pred_fallthru
      _
    // Predicated region
    $region50: #{tpu_custom_call.1} parent=1 // pred_check
      _
    $region51: #{tpu_custom_call.1} parent=1 // pred_check_branch
      %1498 = sbr.rel (0) target = $region53
    $region52: #{tpu_custom_call.1} parent=1 // pred_region
      %1499 = dma.done [#allocation5], 128
    $region53: #{tpu_custom_call.1} parent=1 // pred_fallthru
      _
    %1500 = vsyncpa [#allocation4], 1
    %1501 = vsyncpa [#allocation7], 1
    %1502 = vsyncpa [#allocation5], 1

</llo_original>
